<compile_context>
chip_gen: v7x
topology: tpu7x:2x2x1
jax: 0.10.0
libtpu: 0.0.40
codegen_flags: <defaults>
</compile_context>

<pallas_src>
import jax
import jax.numpy as jnp
from jax.experimental import pallas as pl
from jax.experimental.pallas import tpu as pltpu

LANE = 128  # TPU lane width; hidden/head dims are zero-padded to this.


# ---------------------------------------------------------------------------
# Pallas kernel: full GraphA2C forward for G graphs per grid step.
# ---------------------------------------------------------------------------
def graph_a2c_kernel(
    a_ref,     # (G*N, G*N)     bf16  block-diagonal normalized adjacency
    x_ref,     # (G*N, F)       bf16  stacked node features (unpadded F)
    w_ref,     # (4*LANE, LANE) bf16  packed weights: [Wfc | W1 | W2 | Whead]
    b_ref,     # (8, LANE)      f32   rows 0..3 = bfc, b1, b2, bhead
    out_ref,   # (G, LANE)      f32   lanes [0:A] = logits, lane A = value
):
    gn, feat = x_ref.shape
    g = out_ref.shape[0]
    n = gn // g

    a = a_ref[...]                                   # already bf16 + normalized

    # Tile-aligned static views into the weight slab (zero-cost).
    wfc = w_ref[0:feat, :]                           # (F, LANE)
    w1 = w_ref[1 * LANE:2 * LANE, :]
    w2 = w_ref[2 * LANE:3 * LANE, :]
    wh = w_ref[3 * LANE:4 * LANE, :]

    bfc = b_ref[0:1, :]
    b1 = b_ref[1:2, :]
    b2 = b_ref[2:3, :]
    bh = b_ref[3:4, :]

    # x = relu(node_fc(nodes))            -- bf16 MXU dot, f32 accum + relu
    h = jnp.dot(x_ref[...], wfc, preferred_element_type=jnp.float32)
    h = jnp.maximum(h + bfc, 0.0)

    # x = relu(conv1(x, edge_index))      -- GCN: A_hat @ (h W1) + b1
    h1 = jnp.dot(h.astype(jnp.bfloat16), w1, preferred_element_type=jnp.float32)
    h1 = jnp.dot(a, h1.astype(jnp.bfloat16), preferred_element_type=jnp.float32) + b1
    h1 = jnp.maximum(h1, 0.0)

    # F.dropout(x, training=self.training) — identity (eval semantics).
    # TODO(synk): training-mode dropout (p=0.5) would need pltpu.prng_seed /
    #             stateful_bernoulli; omitted to keep the forward deterministic.

    # x = relu(conv2(x, edge_index))
    h2 = jnp.dot(h1.astype(jnp.bfloat16), w2, preferred_element_type=jnp.float32)
    h2 = jnp.dot(a, h2.astype(jnp.bfloat16), preferred_element_type=jnp.float32) + b2
    h2 = jnp.maximum(h2, 0.0)

    # Fused actor|critic head on all G*N node rows (full MXU occupancy), then
    # global_mean_pool per graph via a (G, G*N) selector matmul — by linearity
    # mean_rows(h2) @ Wh == mean_rows(h2 @ Wh).
    p = jnp.dot(h2.astype(jnp.bfloat16), wh, preferred_element_type=jnp.float32)

    row_ids = jax.lax.broadcasted_iota(jnp.int32, (g, gn), 0)
    col_ids = jax.lax.broadcasted_iota(jnp.int32, (g, gn), 1)
    in_graph = (col_ids >= row_ids * n) & (col_ids < (row_ids + 1) * n)
    pool = jnp.where(in_graph, 1.0 / n, 0.0).astype(jnp.bfloat16)
    pooled = jnp.dot(pool, p.astype(jnp.bfloat16),
                     preferred_element_type=jnp.float32)

    out_ref[...] = pooled + bh


# ---------------------------------------------------------------------------
# Glue: block-diagonal normalized adjacency per grid step (PyG GCNConv norm).
# One-hot matmul formulation — no XLA scatter.
# ---------------------------------------------------------------------------
def build_blockdiag_gcn_adj(edge_links, num_nodes, group):
    """edge_links: (B, E, 2) int [source, target]; B divisible by `group`.
    Returns (B // group, group*N, group*N) f32 = D^-1/2 (A + I) D^-1/2."""
    batch, num_edges, _ = edge_links.shape
    steps = batch // group
    gn = group * num_nodes

    el = edge_links.reshape(steps, group, num_edges, 2)
    offs = (jnp.arange(group, dtype=el.dtype) * num_nodes)[None, :, None, None]
    el = (el + offs).reshape(steps, group * num_edges, 2)

    def one_step(links):
        src, dst = links[:, 0], links[:, 1]
        oh_src = jax.nn.one_hot(src, gn, dtype=jnp.float32)   # (G*E, GN)
        oh_dst = jax.nn.one_hot(dst, gn, dtype=jnp.float32)   # (G*E, GN)
        # message flows source -> target:  A[target, source] += 1 ; self loops
        adj = jnp.dot(oh_dst.T, oh_src) + jnp.eye(gn, dtype=jnp.float32)
        deg = jnp.sum(adj, axis=1)                             # in-degree + 1
        dinv = jax.lax.rsqrt(jnp.maximum(deg, 1e-12))
        return adj * dinv[:, None] * dinv[None, :]

    # TODO(synk): for static topologies cache this across calls, or fuse the
    #             build into the Pallas kernel (iota one-hots + MXU matmul).
    return jax.vmap(one_step)(el)


def _graphs_per_step(batch, num_nodes, target_rows=256):
    """Graphs per grid step: aim for >= target_rows node-rows per step (MXU
    occupancy on v6e/v7x), keep >= 2 grid steps when the batch allows (v7x
    megacore), and keep row blocks 8-aligned."""
    cap = batch // 2 if batch >= 2 else batch
    hi = min(cap, max(1, target_rows // max(1, num_nodes)))
    for g in range(hi, 0, -1):
        if batch % g == 0 and g % 8 == 0 and (g * num_nodes) % 8 == 0:
            return g
    return batch  # fallback: single grid step, full-extent blocks (always legal)


# ---------------------------------------------------------------------------
# Wrapper: batched over B independent graphs, G graphs per grid step.
# ---------------------------------------------------------------------------
def graph_a2c_forward(nodes, edge_links, params, num_actions):
    """nodes: (B, N, F) f32; edge_links: (B, E, 2) int32 -> (logits, value)."""
    batch, num_nodes, feat = nodes.shape
    assert num_actions + 1 <= LANE and feat <= LANE

    group = _graphs_per_step(batch, num_nodes)
    steps = batch // group
    gn = group * num_nodes

    # Normalized block-diagonal adjacency per step, shipped in bf16.
    a_blk = build_blockdiag_gcn_adj(edge_links, num_nodes, group).astype(jnp.bfloat16)

    # Node features stacked to (B*N, F) — no lane padding, shipped in bf16.
    x_flat = nodes.reshape(batch * num_nodes, feat).astype(jnp.bfloat16)

    w_slab = params["w_slab"]   # (4*LANE, LANE) bf16
    b_slab = params["b_slab"]   # (8, LANE)      f32

    flops_step = (2 * gn * feat * LANE            # node_fc
                  + 3 * 2 * gn * LANE * LANE      # W1, W2, head
                  + 2 * 2 * gn * gn * LANE        # two A_hat propagations
                  + 2 * group * gn * LANE)        # mean-pool matmul
    bytes_accessed = (a_blk.size * a_blk.dtype.itemsize
                      + x_flat.size * x_flat.dtype.itemsize
                      + w_slab.size * w_slab.dtype.itemsize
                      + b_slab.size * b_slab.dtype.itemsize
                      + batch * LANE * 4)

    # TODO(synk): for large N, ship A tiled from HBM (memory_space=pl.ANY) and
    #             raise vmem_limit_bytes (v7x has 64 MiB VMEM, v5e 16 MiB scoped
    #             default); unnecessary at these sizes.
    out = pl.pallas_call(
        graph_a2c_kernel,
        out_shape=jax.ShapeDtypeStruct((batch, LANE), jnp.float32),
        grid=(steps,),
        in_specs=[
            pl.BlockSpec((None, gn, gn), lambda s: (s, 0, 0)),
            pl.BlockSpec((gn, feat), lambda s: (s, 0)),
            # weights / biases: same block every step -> stay VMEM-resident
            pl.BlockSpec((4 * LANE, LANE), lambda s: (0, 0)),
            pl.BlockSpec((8, LANE), lambda s: (0, 0)),
        ],
        out_specs=pl.BlockSpec((group, LANE), lambda s: (s, 0)),
        compiler_params=pltpu.CompilerParams(
            dimension_semantics=("parallel",)),
        cost_estimate=pl.CostEstimate(
            flops=steps * flops_step, transcendentals=0,
            bytes_accessed=bytes_accessed),
    )(a_blk, x_flat, w_slab, b_slab)

    logits = out[:, :num_actions]                     # (B, A)
    value = out[:, num_actions:num_actions + 1]       # (B, 1)
    return logits, value


# ---------------------------------------------------------------------------
# Deterministic parameter init (shapes follow GraphA2C.__init__), packed into
# one bf16 weight slab and one f32 bias slab (lane-padded to 128).
# ---------------------------------------------------------------------------
def init_params(key, node_feature_dim, output_dim, num_actions):
    assert max(node_feature_dim, output_dim, num_actions + 1) <= LANE
    ks = jax.random.split(key, 10)

    def lin(kw, kb, fan_in, fan_out):
        bound = 1.0 / jnp.sqrt(fan_in)
        w = jax.random.uniform(kw, (fan_in, fan_out), jnp.float32, -bound, bound)
        b = jax.random.uniform(kb, (fan_out,), jnp.float32, -bound, bound)
        return w, b

    wfc, bfc = lin(ks[0], ks[1], node_feature_dim, output_dim)   # node_fc
    w1, b1 = lin(ks[2], ks[3], output_dim, output_dim)           # conv1
    w2, b2 = lin(ks[4], ks[5], output_dim, output_dim)           # conv2
    wa, ba = lin(ks[6], ks[7], output_dim, num_actions)          # actor
    wc, bc = lin(ks[8], ks[9], output_dim, 1)                    # critic

    # Fused actor|critic head: (D, A+1), (A+1,)
    wh = jnp.concatenate([wa, wc], axis=1)
    bh = jnp.concatenate([ba, bc], axis=0)

    def pad_w(w):
        out = jnp.zeros((LANE, LANE), jnp.float32)
        return out.at[: w.shape[0], : w.shape[1]].set(w)

    def pad_b(b):
        return jnp.zeros((LANE,), jnp.float32).at[: b.shape[0]].set(b)

    w_slab = jnp.concatenate(
        [pad_w(wfc), pad_w(w1), pad_w(w2), pad_w(wh)], axis=0
    ).astype(jnp.bfloat16)                                       # (4*LANE, LANE)

    zero_row = jnp.zeros((LANE,), jnp.float32)
    b_slab = jnp.stack(
        [pad_b(bfc), pad_b(b1), pad_b(b2), pad_b(bh),
         zero_row, zero_row, zero_row, zero_row], axis=0)        # (8, LANE)

    return dict(w_slab=w_slab, b_slab=b_slab)


if __name__ == "__main__":
    key = jax.random.PRNGKey(0)
    k_nodes, k_params = jax.random.split(key)

    # 64 graphs, 8 nodes each, 16-dim features, ring topology -> 32 graphs per
    # grid step (256 node-rows per step), grid = (2,) for v7x megacore.
    batch = 64
    num_nodes = 8
    node_feature_dim = 16
    output_dim = 32
    num_actions = 4

    nodes = jax.random.normal(
        k_nodes, (batch, num_nodes, node_feature_dim), jnp.float32)

    # bidirectional ring: edges (i -> i+1) and (i+1 -> i), shared topology
    fwd = jnp.stack(
        [jnp.arange(num_nodes), (jnp.arange(num_nodes) + 1) % num_nodes], axis=1)
    bwd = fwd[:, ::-1]
    edge_links_single = jnp.concatenate([fwd, bwd], axis=0).astype(jnp.int32)
    edge_links = jnp.broadcast_to(
        edge_links_single, (batch,) + edge_links_single.shape)   # (B, 2N, 2)

    params = init_params(k_params, node_feature_dim, output_dim, num_actions)

    logits, value = graph_a2c_forward(nodes, edge_links, params, num_actions)
    jax.block_until_ready((logits, value))

    assert logits.shape == (batch, num_actions) and value.shape == (batch, 1)
    assert bool(jnp.all(jnp.isfinite(logits))) and bool(jnp.all(jnp.isfinite(value)))
    print("KERNEL_OK")
</pallas_src>

<mosaic_0001>
module attributes {stable_mosaic.version = 11 : i64} {
  func.func @graph_a2c_kernel(%arg0: i32, %arg1: memref<1x256x256xbf16, #tpu.memory_space<vmem>>, %arg2: memref<256x16xbf16, #tpu.memory_space<vmem>>, %arg3: memref<512x128xbf16, #tpu.memory_space<vmem>>, %arg4: memref<8x128xf32, #tpu.memory_space<vmem>>, %arg5: memref<32x128xf32, #tpu.memory_space<vmem>>) attributes {dimension_semantics = [#tpu.dimension_semantics<parallel>], iteration_bounds = array<i64: 2>, scalar_prefetch = 0 : i64, scratch_operands = 0 : i64, tpu.core_type = #tpu.core_type<tc>, window_params = [{transform_indices = @transform_0, window_bounds = array<i64: 1, 256, 256>}, {transform_indices = @transform_1, window_bounds = array<i64: 256, 16>}, {pipeline_mode = #tpu.pipeline_mode<synchronous>, transform_indices = @transform_2, window_bounds = array<i64: 512, 128>}, {pipeline_mode = #tpu.pipeline_mode<synchronous>, transform_indices = @transform_3, window_bounds = array<i64: 8, 128>}, {transform_indices = @transform_4, window_bounds = array<i64: 32, 128>}]} {
    %c0 = arith.constant 0 : index
    %c0_0 = arith.constant 0 : index
    %c0_1 = arith.constant 0 : index
    %0 = vector.load %arg1[%c0, %c0_0, %c0_1] : memref<1x256x256xbf16, #tpu.memory_space<vmem>>, vector<1x256x256xbf16>
    %1 = vector.shape_cast %0 : vector<1x256x256xbf16> to vector<256x256xbf16>
    %c0_2 = arith.constant 0 : index
    %c0_3 = arith.constant 0 : index
    %2 = vector.load %arg3[%c0_2, %c0_3] : memref<512x128xbf16, #tpu.memory_space<vmem>>, vector<16x128xbf16>
    %c128 = arith.constant 128 : index
    %c0_4 = arith.constant 0 : index
    %3 = vector.load %arg3[%c128, %c0_4] : memref<512x128xbf16, #tpu.memory_space<vmem>>, vector<128x128xbf16>
    %c256 = arith.constant 256 : index
    %c0_5 = arith.constant 0 : index
    %4 = vector.load %arg3[%c256, %c0_5] : memref<512x128xbf16, #tpu.memory_space<vmem>>, vector<128x128xbf16>
    %c384 = arith.constant 384 : index
    %c0_6 = arith.constant 0 : index
    %5 = vector.load %arg3[%c384, %c0_6] : memref<512x128xbf16, #tpu.memory_space<vmem>>, vector<128x128xbf16>
    %c0_7 = arith.constant 0 : index
    %c0_8 = arith.constant 0 : index
    %6 = vector.load %arg4[%c0_7, %c0_8] : memref<8x128xf32, #tpu.memory_space<vmem>>, vector<1x128xf32>
    %c1 = arith.constant 1 : index
    %c0_9 = arith.constant 0 : index
    %7 = vector.load %arg4[%c1, %c0_9] : memref<8x128xf32, #tpu.memory_space<vmem>>, vector<1x128xf32>
    %c2 = arith.constant 2 : index
    %c0_10 = arith.constant 0 : index
    %8 = vector.load %arg4[%c2, %c0_10] : memref<8x128xf32, #tpu.memory_space<vmem>>, vector<1x128xf32>
    %c3 = arith.constant 3 : index
    %c0_11 = arith.constant 0 : index
    %9 = vector.load %arg4[%c3, %c0_11] : memref<8x128xf32, #tpu.memory_space<vmem>>, vector<1x128xf32>
    %c0_12 = arith.constant 0 : index
    %c0_13 = arith.constant 0 : index
    %10 = vector.load %arg2[%c0_12, %c0_13] : memref<256x16xbf16, #tpu.memory_space<vmem>>, vector<256x16xbf16>
    %cst = arith.constant dense<0.000000e+00> : vector<256x128xf32>
    %11 = tpu.matmul %10, %2, %cst {dimension_numbers = #tpu.dot_dimension_numbers<[1], [0], [0], [1], [0, 0, 1, 1], [], []>} : vector<256x16xbf16>, vector<16x128xbf16>, vector<256x128xf32> -> vector<256x128xf32>
    %12 = vector.broadcast %6 : vector<1x128xf32> to vector<256x128xf32>
    %13 = arith.addf %11, %12 : vector<256x128xf32>
    %cst_14 = arith.constant 0.000000e+00 : f32
    %14 = vector.broadcast %cst_14 : f32 to vector<256x128xf32>
    %15 = arith.maximumf %13, %14 : vector<256x128xf32>
    %16 = arith.truncf %15 : vector<256x128xf32> to vector<256x128xbf16>
    %cst_15 = arith.constant dense<0.000000e+00> : vector<256x128xf32>
    %17 = tpu.matmul %16, %3, %cst_15 {dimension_numbers = #tpu.dot_dimension_numbers<[1], [0], [0], [1], [0, 0, 1, 1], [], []>} : vector<256x128xbf16>, vector<128x128xbf16>, vector<256x128xf32> -> vector<256x128xf32>
    %18 = arith.truncf %17 : vector<256x128xf32> to vector<256x128xbf16>
    %cst_16 = arith.constant dense<0.000000e+00> : vector<256x128xf32>
    %19 = tpu.matmul %1, %18, %cst_16 {dimension_numbers = #tpu.dot_dimension_numbers<[1], [0], [0], [1], [0, 0, 1, 1], [], []>} : vector<256x256xbf16>, vector<256x128xbf16>, vector<256x128xf32> -> vector<256x128xf32>
    %20 = vector.broadcast %7 : vector<1x128xf32> to vector<256x128xf32>
    %21 = arith.addf %19, %20 : vector<256x128xf32>
    %cst_17 = arith.constant 0.000000e+00 : f32
    %22 = vector.broadcast %cst_17 : f32 to vector<256x128xf32>
    %23 = arith.maximumf %21, %22 : vector<256x128xf32>
    %24 = arith.truncf %23 : vector<256x128xf32> to vector<256x128xbf16>
    %cst_18 = arith.constant dense<0.000000e+00> : vector<256x128xf32>
    %25 = tpu.matmul %24, %4, %cst_18 {dimension_numbers = #tpu.dot_dimension_numbers<[1], [0], [0], [1], [0, 0, 1, 1], [], []>} : vector<256x128xbf16>, vector<128x128xbf16>, vector<256x128xf32> -> vector<256x128xf32>
    %26 = arith.truncf %25 : vector<256x128xf32> to vector<256x128xbf16>
    %cst_19 = arith.constant dense<0.000000e+00> : vector<256x128xf32>
    %27 = tpu.matmul %1, %26, %cst_19 {dimension_numbers = #tpu.dot_dimension_numbers<[1], [0], [0], [1], [0, 0, 1, 1], [], []>} : vector<256x256xbf16>, vector<256x128xbf16>, vector<256x128xf32> -> vector<256x128xf32>
    %28 = vector.broadcast %8 : vector<1x128xf32> to vector<256x128xf32>
    %29 = arith.addf %27, %28 : vector<256x128xf32>
    %cst_20 = arith.constant 0.000000e+00 : f32
    %30 = vector.broadcast %cst_20 : f32 to vector<256x128xf32>
    %31 = arith.maximumf %29, %30 : vector<256x128xf32>
    %32 = arith.truncf %31 : vector<256x128xf32> to vector<256x128xbf16>
    %cst_21 = arith.constant dense<0.000000e+00> : vector<256x128xf32>
    %33 = tpu.matmul %32, %5, %cst_21 {dimension_numbers = #tpu.dot_dimension_numbers<[1], [0], [0], [1], [0, 0, 1, 1], [], []>} : vector<256x128xbf16>, vector<128x128xbf16>, vector<256x128xf32> -> vector<256x128xf32>
    %34 = tpu.iota {dimensions = array<i32: 0>} : vector<32x256xi32>
    %35 = tpu.iota {dimensions = array<i32: 1>} : vector<32x256xi32>
    %c8_i32 = arith.constant 8 : i32
    %36 = vector.broadcast %c8_i32 : i32 to vector<32x256xi32>
    %37 = arith.muli %34, %36 : vector<32x256xi32>
    %38 = arith.cmpi sge, %35, %37 : vector<32x256xi32>
    %c1_i32 = arith.constant 1 : i32
    %39 = vector.broadcast %c1_i32 : i32 to vector<32x256xi32>
    %40 = arith.addi %34, %39 : vector<32x256xi32>
    %c8_i32_22 = arith.constant 8 : i32
    %41 = vector.broadcast %c8_i32_22 : i32 to vector<32x256xi32>
    %42 = arith.muli %40, %41 : vector<32x256xi32>
    %43 = arith.cmpi slt, %35, %42 : vector<32x256xi32>
    %44 = arith.andi %38, %43 : vector<32x256xi1>
    %cst_23 = arith.constant 1.250000e-01 : f32
    %cst_24 = arith.constant 0.000000e+00 : f32
    %45 = vector.broadcast %cst_23 : f32 to vector<32x256xf32>
    %46 = vector.broadcast %cst_24 : f32 to vector<32x256xf32>
    %47 = arith.select %44, %45, %46 : vector<32x256xi1>, vector<32x256xf32>
    %48 = arith.truncf %47 : vector<32x256xf32> to vector<32x256xbf16>
    %49 = arith.truncf %33 : vector<256x128xf32> to vector<256x128xbf16>
    %cst_25 = arith.constant dense<0.000000e+00> : vector<32x128xf32>
    %50 = tpu.matmul %48, %49, %cst_25 {dimension_numbers = #tpu.dot_dimension_numbers<[1], [0], [0], [1], [0, 0, 1, 1], [], []>} : vector<32x256xbf16>, vector<256x128xbf16>, vector<32x128xf32> -> vector<32x128xf32>
    %51 = vector.broadcast %9 : vector<1x128xf32> to vector<32x128xf32>
    %52 = arith.addf %50, %51 : vector<32x128xf32>
    %c0_26 = arith.constant 0 : index
    %c0_27 = arith.constant 0 : index
    %53 = vector.load %arg5[%c0_26, %c0_27] : memref<32x128xf32, #tpu.memory_space<vmem>>, vector<32x128xf32>
    tpu.vector_store %arg5[%c0_26, %c0_27], %52 {strides = array<i32>} : memref<32x128xf32, #tpu.memory_space<vmem>>, vector<32x128xf32>,
    return
  }
  func.func @transform_0(%arg0: i32) -> (i32, i32, i32) {
    %c0_i32 = arith.constant 0 : i32
    %c0_i32_0 = arith.constant 0 : i32
    %c0_i32_1 = arith.constant 0 : i32
    return %arg0, %c0_i32, %c0_i32_0 : i32, i32, i32
  }
  func.func @transform_1(%arg0: i32) -> (i32, i32) {
    %c0_i32 = arith.constant 0 : i32
    %c0_i32_0 = arith.constant 0 : i32
    return %arg0, %c0_i32 : i32, i32
  }
  func.func @transform_2(%arg0: i32) -> (i32, i32) {
    %c0_i32 = arith.constant 0 : i32
    %c0_i32_0 = arith.constant 0 : i32
    %c0_i32_1 = arith.constant 0 : i32
    return %c0_i32, %c0_i32_0 : i32, i32
  }
  func.func @transform_3(%arg0: i32) -> (i32, i32) {
    %c0_i32 = arith.constant 0 : i32
    %c0_i32_0 = arith.constant 0 : i32
    %c0_i32_1 = arith.constant 0 : i32
    return %c0_i32, %c0_i32_0 : i32, i32
  }
  func.func @transform_4(%arg0: i32) -> (i32, i32) {
    %c0_i32 = arith.constant 0 : i32
    %c0_i32_0 = arith.constant 0 : i32
    return %arg0, %c0_i32 : i32, i32
  }
}

</mosaic_0001>

<llo_original>
// kernel: tpu_custom_call.1
$region0: #{tpu_custom_call.1}
  #allocation0 [shape = 'u32[]', space=smem, size = 0x4, offset = 0x4, fixed_abs, tag = 'smem constant byte address 0x4 - core index']
  #allocation1 [shape = 'u32[144,128]{1,0:T(1,128)}', space=vmem, size = 0x12000, scoped, tag = 'internal scratch']
  %s0 = inlined_call_operand.hbm [shape: bf16[2,256,256], index: 0, kind: input, shape index: {}]
  %s1 = inlined_call_operand.vmem [shape: bf16[512,16], index: 1, kind: input, shape index: {}]
  %s2 = inlined_call_operand.vmem [shape: bf16[512,128], index: 2, kind: input, shape index: {}]
  %s3 = inlined_call_operand.vmem [shape: f32[8,128], index: 3, kind: input, shape index: {}]
  %s4 = inlined_call_operand.hbm [shape: f32[64,128], index: 4, kind: output, shape index: {}]
  %s5 = sld [smem:[#allocation0]]
  $region53: #{tpu_custom_call.1} parent=0
    _
  %s7 = ssub.s32 1, %s5
  %s8 = scalar_select 0, %s7, %s5
  $region1: #{tpu_custom_call.1} parent=0
    #allocation2 [shape = 'u8[262144]{0}', space=vmem, size = 0x40000, scoped, tag = 'input window, operand 0']
    #allocation3 [shape = 's32[2]{0}', space=sflag, size = 0x8, scoped, tag = 'scoped memory for tpu_custom_call.1']
    #allocation4 [shape = 's32[2]{0}', space=sflag, size = 0x8, scoped, tag = 'scoped memory for tpu_custom_call.1']
    #allocation5 [shape = 'u8[32768]{0}', space=vmem, size = 0x8000, scoped, tag = 'output window, operand 0']
    %9 = vsyncpa [#allocation3], 0
    %s10 = scalar_lea.sflag [#allocation3], 1
    %11 = vsyncpa %s10, 0
    %12 = vsyncpa [#allocation4], 0
    %s13 = scalar_lea.sflag [#allocation4], 1
    %14 = vsyncpa %s13, 0
    loop: start=0, step=1, limit=4
    $region2: #{tpu_custom_call.1} parent=1 // loop_pre_header
      _
    $region3: #{tpu_custom_call.1} parent=1 // loop_header
      %s16 = sphi 0, %s20
      %p17 = scmp.ge.s32.totalorder %s16, 4
      %s26 = sphi 0, %s28
      %s29 = sphi 0, %s26
      %s30 = sphi 0, %s29
      %s46 = sphi 0, %s30
      %s52 = sphi 0, %s54
      %s55 = sphi 0, %s52
      %s56 = sphi 0, %s55
      %s72 = sphi 0, %s56
      %s76 = sphi 0, %s76
      %s78 = sphi 0, %s76
      %s79 = sphi 0, %s78
      %s93 = sphi 0, %s79
      %s97 = sphi 0, %s97
      %s99 = sphi 0, %s97
      %s100 = sphi 0, %s99
      %s114 = sphi 0, %s100
      %s120 = sphi 0, %s122
      %s123 = sphi 0, %s120
      %s124 = sphi 0, %s123
      %s140 = sphi 0, %s124
    $region4: #{tpu_custom_call.1} parent=1 // loop_header_branch
      %19 = sbr.rel (%p17) target = $region8
    $region5: #{tpu_custom_call.1} parent=1 // loop_body
      %s21 = ssub.s32 %s16, 1
      %s22 = ssub.s32 %s16, 2
      %s23 = sadd.s32 %s16, 1
      %s24 = ssub.s32 %s16, %s23
      %p25 = scmp.eq.s32.totalorder %s24, 0
      %s27 = sadd.s32 %s26, 1
      %s28 = scalar_select %p25, %s26, %s27
      %p31 = pneg %p25
      %p32 = scmp.eq.s32.totalorder %s16, 1
      %p33 = por %p31, %p32
      %p34 = scmp.ne.s32.totalorder %s26, %s29
      %p35 = scmp.eq.s32.totalorder %s16, 0
      %p36 = por %p34, %p35
      %p37 = scmp.ne.s32.totalorder %s26, %s29
      %p38 = scmp.eq.s32.totalorder %s21, 1
      %p39 = por %p37, %p38
      %p40 = scmp.ne.s32.totalorder %s29, %s30
      %p41 = scmp.eq.s32.totalorder %s21, 0
      %p42 = por %p40, %p41
      %p43 = scmp.ne.s32.totalorder %s29, %s30
      %p44 = scmp.eq.s32.totalorder %s22, 1
      %p45 = por %p43, %p44
      %p47 = scmp.ne.s32.totalorder %s30, %s46
      %p48 = scmp.eq.s32.totalorder %s22, 0
      %p49 = por %p47, %p48
      %s50 = ssub.s32 %s16, %s23
      %p51 = scmp.eq.s32.totalorder %s50, 0
      %s53 = sadd.s32 %s52, 1
      %s54 = scalar_select %p51, %s52, %s53
      %p57 = pneg %p51
      %p58 = scmp.eq.s32.totalorder %s16, 1
      %p59 = por %p57, %p58
      %p60 = scmp.ne.s32.totalorder %s52, %s55
      %p61 = scmp.eq.s32.totalorder %s16, 0
      %p62 = por %p60, %p61
      %p63 = scmp.ne.s32.totalorder %s52, %s55
      %p64 = scmp.eq.s32.totalorder %s21, 1
      %p65 = por %p63, %p64
      %p66 = scmp.ne.s32.totalorder %s55, %s56
      %p67 = scmp.eq.s32.totalorder %s21, 0
      %p68 = por %p66, %p67
      %p69 = scmp.ne.s32.totalorder %s55, %s56
      %p70 = scmp.eq.s32.totalorder %s22, 1
      %p71 = por %p69, %p70
      %p73 = scmp.ne.s32.totalorder %s56, %s72
      %p74 = scmp.eq.s32.totalorder %s22, 0
      %p75 = por %p73, %p74
      %s77 = sadd.s32 %s76, 1
      %p80 = scmp.eq.s32.totalorder %s16, 1
      %p81 = scmp.ne.s32.totalorder %s76, %s78
      %p82 = scmp.eq.s32.totalorder %s16, 0
      %p83 = por %p81, %p82
      %p84 = scmp.ne.s32.totalorder %s76, %s78
      %p85 = scmp.eq.s32.totalorder %s21, 1
      %p86 = por %p84, %p85
      %p87 = scmp.ne.s32.totalorder %s78, %s79
      %p88 = scmp.eq.s32.totalorder %s21, 0
      %p89 = por %p87, %p88
      %p90 = scmp.ne.s32.totalorder %s78, %s79
      %p91 = scmp.eq.s32.totalorder %s22, 1
      %p92 = por %p90, %p91
      %p94 = scmp.ne.s32.totalorder %s79, %s93
      %p95 = scmp.eq.s32.totalorder %s22, 0
      %p96 = por %p94, %p95
      %s98 = sadd.s32 %s97, 1
      %p101 = scmp.eq.s32.totalorder %s16, 1
      %p102 = scmp.ne.s32.totalorder %s97, %s99
      %p103 = scmp.eq.s32.totalorder %s16, 0
      %p104 = por %p102, %p103
      %p105 = scmp.ne.s32.totalorder %s97, %s99
      %p106 = scmp.eq.s32.totalorder %s21, 1
      %p107 = por %p105, %p106
      %p108 = scmp.ne.s32.totalorder %s99, %s100
      %p109 = scmp.eq.s32.totalorder %s21, 0
      %p110 = por %p108, %p109
      %p111 = scmp.ne.s32.totalorder %s99, %s100
      %p112 = scmp.eq.s32.totalorder %s22, 1
      %p113 = por %p111, %p112
      %p115 = scmp.ne.s32.totalorder %s100, %s114
      %p116 = scmp.eq.s32.totalorder %s22, 0
      %p117 = por %p115, %p116
      %s118 = ssub.s32 %s16, %s23
      %p119 = scmp.eq.s32.totalorder %s118, 0
      %s121 = sadd.s32 %s120, 1
      %s122 = scalar_select %p119, %s120, %s121
      %p125 = pneg %p119
      %p126 = scmp.eq.s32.totalorder %s16, 1
      %p127 = por %p125, %p126
      %p128 = scmp.ne.s32.totalorder %s120, %s123
      %p129 = scmp.eq.s32.totalorder %s16, 0
      %p130 = por %p128, %p129
      %p131 = scmp.ne.s32.totalorder %s120, %s123
      %p132 = scmp.eq.s32.totalorder %s21, 1
      %p133 = por %p131, %p132
      %p134 = scmp.ne.s32.totalorder %s123, %s124
      %p135 = scmp.eq.s32.totalorder %s21, 0
      %p136 = por %p134, %p135
      %p137 = scmp.ne.s32.totalorder %s123, %s124
      %p138 = scmp.eq.s32.totalorder %s22, 1
      %p139 = por %p137, %p138
      %p141 = scmp.ne.s32.totalorder %s124, %s140
      %p142 = scmp.eq.s32.totalorder %s22, 0
      %p143 = por %p141, %p142
      %p144 = scmp.le.s32.totalorder 1, %s16
      %p145 = scmp.lt.s32.totalorder %s16, 3
      %p146 = pnand %p144, %p145
      %p147 = pneg %p146
      // Predicated region
      $region9: #{tpu_custom_call.1} parent=5 // pred_check
        _
      $region10: #{tpu_custom_call.1} parent=5 // pred_check_branch
        %149 = sbr.rel (%p146) target = $region12
      $region11: #{tpu_custom_call.1} parent=5 // pred_region
        %s150 = ssub.s32 %s16, 1
        // Predicated region
        $region13: #{tpu_custom_call.1} parent=11 // pred_check
          %p151 = pneg %p89
        $region14: #{tpu_custom_call.1} parent=11 // pred_check_branch
          %153 = sbr.rel (%p151) target = $region16
        $region15: #{tpu_custom_call.1} parent=11 // pred_region
          _
        $region16: #{tpu_custom_call.1} parent=11 // pred_fallthru
          _
        // Predicated region
        $region17: #{tpu_custom_call.1} parent=11 // pred_check
          %p154 = pneg %p110
        $region18: #{tpu_custom_call.1} parent=11 // pred_check_branch
          %156 = sbr.rel (%p154) target = $region20
        $region19: #{tpu_custom_call.1} parent=11 // pred_region
          _
        $region20: #{tpu_custom_call.1} parent=11 // pred_fallthru
          _
      $region12: #{tpu_custom_call.1} parent=5 // pred_fallthru
        _
      %p157 = scmp.lt.s32.totalorder %s16, 2
      // Predicated region
      $region21: #{tpu_custom_call.1} parent=5 // pred_check
        %p158 = pneg %p157
      $region22: #{tpu_custom_call.1} parent=5 // pred_check_branch
        %160 = sbr.rel (%p158) target = $region24
      $region23: #{tpu_custom_call.1} parent=5 // pred_region
        // Predicated region
        $region25: #{tpu_custom_call.1} parent=23 // pred_check
          %p161 = pneg %p36
        $region26: #{tpu_custom_call.1} parent=23 // pred_check_branch
          %163 = sbr.rel (%p161) target = $region28
        $region27: #{tpu_custom_call.1} parent=23 // pred_region
          %s164 = sand.u32 %s26, 1
          %s165 = scalar_lea.sflag [#allocation3], %s164
          %s166 = sand.u32 %s26, 1
          %s167 = smul.addr %s166, 256
          %s168 = scalar_lea.vmem [#allocation2], %s167
          %s170 = ssub.s32 4096, 4096
          %171 = vsyncadd %s165, %s170
          %s172 = smul.addr %s16, 64
          %s173 = smul.addr %s172, 64
          %s174 = scalar_lea.hbm %s0, %s173
          %s175 = sshll.u32 %s168, 4
          %s176 = int_to_ptr.vmem [resolvable:$true] %s175
          %181 = dma.hbm_to_vmem [thread:$0]  %s174, 4096, %s176, %s165, 128, 128, 8
        $region28: #{tpu_custom_call.1} parent=23 // pred_fallthru
          _
        // Predicated region
        $region29: #{tpu_custom_call.1} parent=23 // pred_check
          %p182 = pneg %p62
        $region30: #{tpu_custom_call.1} parent=23 // pred_check_branch
          %184 = sbr.rel (%p182) target = $region32
        $region31: #{tpu_custom_call.1} parent=23 // pred_region
          %s185 = smul.u32 32, %s16
          %p186 = scmp.lt.s32.totalorder %s185, 63
          %s187 = scalar_select %p186, %s185, 63
          %s188 = smul.addr %s187, 4
          %s189 = scalar_lea.vmem %s1, %s188
          %s190 = smul.u32 32, %s16
        $region32: #{tpu_custom_call.1} parent=23 // pred_fallthru
          _
      $region24: #{tpu_custom_call.1} parent=5 // pred_fallthru
        _
      %p191 = scmp.le.s32.totalorder 1, %s16
      %p192 = scmp.lt.s32.totalorder %s16, 3
      %p193 = pnand %p191, %p192
      %p194 = pneg %p193
      // Predicated region
      $region33: #{tpu_custom_call.1} parent=5 // pred_check
        _
      $region34: #{tpu_custom_call.1} parent=5 // pred_check_branch
        %196 = sbr.rel (%p193) target = $region36
      $region35: #{tpu_custom_call.1} parent=5 // pred_region
        %s197 = ssub.s32 %s16, 1
        %s198 = sand.u32 %s29, 1
        %s199 = scalar_lea.sflag [#allocation3], %s198
        %s200 = sand.u32 %s29, 1
        %s201 = smul.addr %s200, 256
        %s202 = scalar_lea.vmem [#allocation2], %s201
        // Predicated region
        $region37: #{tpu_custom_call.1} parent=35 // pred_check
          %p203 = pneg %p42
        $region38: #{tpu_custom_call.1} parent=35 // pred_check_branch
          %205 = sbr.rel (%p203) target = $region40
        $region39: #{tpu_custom_call.1} parent=35 // pred_region
          %206 = dma.done %s199, 4096
        $region40: #{tpu_custom_call.1} parent=35 // pred_fallthru
          _
        %s207 = sand.u32 %s29, 1
        %s208 = scalar_lea.sflag [#allocation3], %s207
        %s209 = sand.u32 %s29, 1
        %s210 = smul.addr %s209, 256
        %s211 = scalar_lea.vmem [#allocation2], %s210
        %p212 = pneg %p42
        %p213 = pneg %p39
        %s214 = smul.u32 32, %s21
        %p215 = scmp.lt.s32.totalorder %s214, 63
        %s216 = scalar_select %p215, %s214, 63
        %s217 = smul.addr %s216, 4
        %s218 = scalar_lea.vmem %s1, %s217
        %p219 = pneg %p68
        %p220 = pneg %p65
        %p221 = pneg %p89
        %p222 = pneg %p86
        %p223 = pneg %p110
        %p224 = pneg %p107
        %p225 = pneg %p136
        %p226 = pneg %p133
        %s227 = sand.u32 %s123, 1
        %s228 = scalar_lea.sflag [#allocation4], %s227
        %s229 = sand.u32 %s123, 1
        %s230 = smul.addr %s229, 32
        %s231 = scalar_lea.vmem [#allocation5], %s230
        %s232 = smul.u32 32, %s21
        %p233 = scmp.lt.s32.totalorder %s232, 63
        %s234 = scalar_select %p233, %s232, 63
        %s235 = smul.addr %s234, 4
        %s236 = scalar_lea.vmem %s1, %s235
        %s237 = smul.u32 32, %s21
        %s238 = smul.u32 4, %s21
        %v240 = vld [vmem:[%s202] sm:$0xff]
        %v241 = vld [vmem:[%s202 + $0x8] sm:$0xff]
        %v242 = vld [vmem:[%s202 + $0x10] sm:$0xff]
        %v243 = vld [vmem:[%s202 + $0x18] sm:$0xff]
        %v244 = vld [vmem:[%s202 + $0x20] sm:$0xff]
        %v245 = vld [vmem:[%s202 + $0x28] sm:$0xff]
        %v246 = vld [vmem:[%s202 + $0x30] sm:$0xff]
        %v247 = vld [vmem:[%s202 + $0x38] sm:$0xff]
        %v248 = vld [vmem:[%s202 + $0x40] sm:$0xff]
        %v249 = vld [vmem:[%s202 + $0x48] sm:$0xff]
        %v250 = vld [vmem:[%s202 + $0x50] sm:$0xff]
        %v251 = vld [vmem:[%s202 + $0x58] sm:$0xff]
        %v252 = vld [vmem:[%s202 + $0x60] sm:$0xff]
        %v253 = vld [vmem:[%s202 + $0x68] sm:$0xff]
        %v254 = vld [vmem:[%s202 + $0x70] sm:$0xff]
        %v255 = vld [vmem:[%s202 + $0x78] sm:$0xff]
        %v256 = vld [vmem:[%s202 + $0x80] sm:$0xff]
        %v257 = vld [vmem:[%s202 + $0x88] sm:$0xff]
        %v258 = vld [vmem:[%s202 + $0x90] sm:$0xff]
        %v259 = vld [vmem:[%s202 + $0x98] sm:$0xff]
        %v260 = vld [vmem:[%s202 + $0xa0] sm:$0xff]
        %v261 = vld [vmem:[%s202 + $0xa8] sm:$0xff]
        %v262 = vld [vmem:[%s202 + $0xb0] sm:$0xff]
        %v263 = vld [vmem:[%s202 + $0xb8] sm:$0xff]
        %v264 = vld [vmem:[%s202 + $0xc0] sm:$0xff]
        %v265 = vld [vmem:[%s202 + $0xc8] sm:$0xff]
        %v266 = vld [vmem:[%s202 + $0xd0] sm:$0xff]
        %v267 = vld [vmem:[%s202 + $0xd8] sm:$0xff]
        %v268 = vld [vmem:[%s202 + $0xe0] sm:$0xff]
        %v269 = vld [vmem:[%s202 + $0xe8] sm:$0xff]
        %v270 = vld [vmem:[%s202 + $0xf0] sm:$0xff]
        %v271 = vld [vmem:[%s202 + $0xf8] sm:$0xff]
        %v272 = vld [vmem:[%s2] sm:$0xf]
        %v273 = vld [vmem:[%s2 + $0x4] sm:$0xf]
        %v274 = vld [vmem:[%s2 + $0x40] sm:$0xf]
        %v275 = vld [vmem:[%s2 + $0x44] sm:$0xf]
        %v276 = vld [vmem:[%s2 + $0x48] sm:$0xf]
        %v277 = vld [vmem:[%s2 + $0x4c] sm:$0xf]
        %v278 = vld [vmem:[%s2 + $0x50] sm:$0xf]
        %v279 = vld [vmem:[%s2 + $0x54] sm:$0xf]
        %v280 = vld [vmem:[%s2 + $0x58] sm:$0xf]
        %v281 = vld [vmem:[%s2 + $0x5c] sm:$0xf]
        %v282 = vld [vmem:[%s2 + $0x60] sm:$0xf]
        %v283 = vld [vmem:[%s2 + $0x64] sm:$0xf]
        %v284 = vld [vmem:[%s2 + $0x68] sm:$0xf]
        %v285 = vld [vmem:[%s2 + $0x6c] sm:$0xf]
        %v286 = vld [vmem:[%s2 + $0x70] sm:$0xf]
        %v287 = vld [vmem:[%s2 + $0x74] sm:$0xf]
        %v288 = vld [vmem:[%s2 + $0x78] sm:$0xf]
        %v289 = vld [vmem:[%s2 + $0x7c] sm:$0xf]
        %v290 = vld [vmem:[%s2 + $0x80] sm:$0xf]
        %v291 = vld [vmem:[%s2 + $0x84] sm:$0xf]
        %v292 = vld [vmem:[%s2 + $0x88] sm:$0xf]
        %v293 = vld [vmem:[%s2 + $0x8c] sm:$0xf]
        %v294 = vld [vmem:[%s2 + $0x90] sm:$0xf]
        %v295 = vld [vmem:[%s2 + $0x94] sm:$0xf]
        %v296 = vld [vmem:[%s2 + $0x98] sm:$0xf]
        %v297 = vld [vmem:[%s2 + $0x9c] sm:$0xf]
        %v298 = vld [vmem:[%s2 + $0xa0] sm:$0xf]
        %v299 = vld [vmem:[%s2 + $0xa4] sm:$0xf]
        %v300 = vld [vmem:[%s2 + $0xa8] sm:$0xf]
        %v301 = vld [vmem:[%s2 + $0xac] sm:$0xf]
        %v302 = vld [vmem:[%s2 + $0xb0] sm:$0xf]
        %v303 = vld [vmem:[%s2 + $0xb4] sm:$0xf]
        %v304 = vld [vmem:[%s2 + $0xb8] sm:$0xf]
        %v305 = vld [vmem:[%s2 + $0xbc] sm:$0xf]
        %v306 = vld [vmem:[%s2 + $0xc0] sm:$0xf]
        %v307 = vld [vmem:[%s2 + $0xc4] sm:$0xf]
        %v308 = vld [vmem:[%s2 + $0xc8] sm:$0xf]
        %v309 = vld [vmem:[%s2 + $0xcc] sm:$0xf]
        %v310 = vld [vmem:[%s2 + $0xd0] sm:$0xf]
        %v311 = vld [vmem:[%s2 + $0xd4] sm:$0xf]
        %v312 = vld [vmem:[%s2 + $0xd8] sm:$0xf]
        %v313 = vld [vmem:[%s2 + $0xdc] sm:$0xf]
        %v314 = vld [vmem:[%s2 + $0xe0] sm:$0xf]
        %v315 = vld [vmem:[%s2 + $0xe4] sm:$0xf]
        %v316 = vld [vmem:[%s2 + $0xe8] sm:$0xf]
        %v317 = vld [vmem:[%s2 + $0xec] sm:$0xf]
        %v318 = vld [vmem:[%s2 + $0xf0] sm:$0xf]
        %v319 = vld [vmem:[%s2 + $0xf4] sm:$0xf]
        %v320 = vld [vmem:[%s2 + $0xf8] sm:$0xf]
        %v321 = vld [vmem:[%s2 + $0xfc] sm:$0xf]
        %v322 = vld [vmem:[%s3] sm:$0x1]
        %v323 = vld [vmem:[%s3 + $0x1] sm:$0x1]
        %v324 = vld [vmem:[%s3 + $0x2] sm:$0x1]
        %v325 = vld [vmem:[%s3 + $0x3] sm:$0x1]
        %v326 = vld [vmem:[%s236] sm:$0xf]
        %v327 = vld [vmem:[%s236 + $0x4] sm:$0xf]
        %v328 = vld [vmem:[%s236 + $0x8] sm:$0xf]
        %v329 = vld [vmem:[%s236 + $0xc] sm:$0xf]
        %v330 = vld [vmem:[%s236 + $0x10] sm:$0xf]
        %v331 = vld [vmem:[%s236 + $0x14] sm:$0xf]
        %v332 = vld [vmem:[%s236 + $0x18] sm:$0xf]
        %v333 = vld [vmem:[%s236 + $0x1c] sm:$0xf]
        %v334 = vld [vmem:[%s236 + $0x20] sm:$0xf]
        %v335 = vld [vmem:[%s236 + $0x24] sm:$0xf]
        %v336 = vld [vmem:[%s236 + $0x28] sm:$0xf]
        %v337 = vld [vmem:[%s236 + $0x2c] sm:$0xf]
        %v338 = vld [vmem:[%s236 + $0x30] sm:$0xf]
        %v339 = vld [vmem:[%s236 + $0x34] sm:$0xf]
        %v340 = vld [vmem:[%s236 + $0x38] sm:$0xf]
        %v341 = vld [vmem:[%s236 + $0x3c] sm:$0xf]
        %v342 = vld [vmem:[%s236 + $0x40] sm:$0xf]
        %v343 = vld [vmem:[%s236 + $0x44] sm:$0xf]
        %v344 = vld [vmem:[%s236 + $0x48] sm:$0xf]
        %v345 = vld [vmem:[%s236 + $0x4c] sm:$0xf]
        %v346 = vld [vmem:[%s236 + $0x50] sm:$0xf]
        %v347 = vld [vmem:[%s236 + $0x54] sm:$0xf]
        %v348 = vld [vmem:[%s236 + $0x58] sm:$0xf]
        %v349 = vld [vmem:[%s236 + $0x5c] sm:$0xf]
        %v350 = vld [vmem:[%s236 + $0x60] sm:$0xf]
        %v351 = vld [vmem:[%s236 + $0x64] sm:$0xf]
        %v352 = vld [vmem:[%s236 + $0x68] sm:$0xf]
        %v353 = vld [vmem:[%s236 + $0x6c] sm:$0xf]
        %v354 = vld [vmem:[%s236 + $0x70] sm:$0xf]
        %v355 = vld [vmem:[%s236 + $0x74] sm:$0xf]
        %v356 = vld [vmem:[%s236 + $0x78] sm:$0xf]
        %v357 = vld [vmem:[%s236 + $0x7c] sm:$0xf]
        %v358 = vlaneseq
        %v359 = vshrl.u32 %v358, 7
        %v360 = vsub.s32 0, %v359
        %v361 = vrot.slane %v322, %v360
        %v394 = vunpack.c.l.b16 %v326
        %v395 = vunpack.c.l.b16 %v327
        %v396 = vunpack.c.l.b16 %v328
        %v397 = vunpack.c.l.b16 %v329
        %v398 = vunpack.c.l.b16 %v330
        %v399 = vunpack.c.l.b16 %v331
        %v400 = vunpack.c.l.b16 %v332
        %v401 = vunpack.c.l.b16 %v333
        %v402 = vunpack.c.l.b16 %v334
        %v403 = vunpack.c.l.b16 %v335
        %v404 = vunpack.c.l.b16 %v336
        %v405 = vunpack.c.l.b16 %v337
        %v406 = vunpack.c.l.b16 %v338
        %v407 = vunpack.c.l.b16 %v339
        %v408 = vunpack.c.l.b16 %v340
        %v409 = vunpack.c.l.b16 %v341
        %v410 = vunpack.c.l.b16 %v342
        %v411 = vunpack.c.l.b16 %v343
        %v412 = vunpack.c.l.b16 %v344
        %v413 = vunpack.c.l.b16 %v345
        %v414 = vunpack.c.l.b16 %v346
        %v415 = vunpack.c.l.b16 %v347
        %v416 = vunpack.c.l.b16 %v348
        %v417 = vunpack.c.l.b16 %v349
        %v418 = vunpack.c.l.b16 %v350
        %v419 = vunpack.c.l.b16 %v351
        %v420 = vunpack.c.l.b16 %v352
        %v421 = vunpack.c.l.b16 %v353
        %v422 = vunpack.c.l.b16 %v354
        %v423 = vunpack.c.l.b16 %v355
        %v424 = vunpack.c.l.b16 %v356
        %v425 = vunpack.c.l.b16 %v357
        %v426 = vpack.c.b16 %v395, %v394
        %v427 = vpack.c.b16 %v397, %v396
        %v428 = vpack.c.b16 %v399, %v398
        %v429 = vpack.c.b16 %v401, %v400
        %v430 = vpack.c.b16 %v403, %v402
        %v431 = vpack.c.b16 %v405, %v404
        %v432 = vpack.c.b16 %v407, %v406
        %v433 = vpack.c.b16 %v409, %v408
        %v434 = vpack.c.b16 %v411, %v410
        %v435 = vpack.c.b16 %v413, %v412
        %v436 = vpack.c.b16 %v415, %v414
        %v437 = vpack.c.b16 %v417, %v416
        %v438 = vpack.c.b16 %v419, %v418
        %v439 = vpack.c.b16 %v421, %v420
        %v440 = vpack.c.b16 %v423, %v422
        %v441 = vpack.c.b16 %v425, %v424
        %v444 = vunpack.c.l.b16 %v272
        %v445 = vunpack.c.l.b16 %v273
        %v446 = vpack.c.b16 %v445, %v444
        %vm448 = vcmask 130048
        %v450 = vsel %vm448, %v426, 0
        %v453 = vsel %vm448, %v427, 0
        %v456 = vsel %vm448, %v428, 0
        %v459 = vsel %vm448, %v429, 0
        %v462 = vsel %vm448, %v430, 0
        %v465 = vsel %vm448, %v431, 0
        %v468 = vsel %vm448, %v432, 0
        %v471 = vsel %vm448, %v433, 0
        %v474 = vsel %vm448, %v434, 0
        %v477 = vsel %vm448, %v435, 0
        %v480 = vsel %vm448, %v436, 0
        %v483 = vsel %vm448, %v437, 0
        %v486 = vsel %vm448, %v438, 0
        %v489 = vsel %vm448, %v439, 0
        %v492 = vsel %vm448, %v440, 0
        %v495 = vsel %vm448, %v441, 0
        %497 = vmatprep.subr.bf16.mxu0 0
        %498 = vmatpush1.bf16.msra.mxu0 %v446
        %499 = vmatprep.subr.bf16.mxu0 0
        %500 = vmatpush1.bf16.msra.mxu0 0
        %501 = vmatprep.subr.bf16.mxu0 0
        %502 = vmatpush1.bf16.msra.mxu0 0
        %503 = vmatprep.subr.bf16.mxu0 0
        %504 = vmatpush1.bf16.msra.mxu0 0
        %505 = vmatprep.subr.bf16.mxu0 0
        %506 = vmatpush1.bf16.msra.mxu0 0
        %507 = vmatprep.subr.bf16.mxu0 0
        %508 = vmatpush1.bf16.msra.mxu0 0
        %509 = vmatprep.subr.bf16.mxu0 0
        %510 = vmatpush1.bf16.msra.mxu0 0
        %511 = vmatprep.subr.bf16.mxu0 0
        %512 = vmatpush1.bf16.msra.mxu0 0
        %513 = vmatprep.subr.bf16.mxu0 0
        %514 = vmatpush1.bf16.msra.mxu0 0
        %515 = vmatprep.subr.bf16.mxu0 0
        %516 = vmatpush1.bf16.msra.mxu0 0
        %517 = vmatprep.subr.bf16.mxu0 0
        %518 = vmatpush1.bf16.msra.mxu0 0
        %519 = vmatprep.subr.bf16.mxu0 0
        %520 = vmatpush1.bf16.msra.mxu0 0
        %521 = vmatprep.subr.bf16.mxu0 0
        %522 = vmatpush1.bf16.msra.mxu0 0
        %523 = vmatprep.subr.bf16.mxu0 0
        %524 = vmatpush1.bf16.msra.mxu0 0
        %525 = vmatprep.subr.bf16.mxu0 0
        %526 = vmatpush1.bf16.msra.mxu0 0
        %527 = vmatprep.subr.bf16.mxu0 0
        %528 = vmatpush1.bf16.msra.mxu0 0
        %529 = vmatprep.mubr.bf16.mxu0 0
        %530 = vmatmul.mubr.bf16.gmra.mrb[0].mxu0 %v450
        %v531 = vpop.f32.mrb[0].mxu0
        %v532 = vadd.f32 %v361, %v531
        %v533 = vpop.f32.mrb[0].mxu0
        %v534 = vpop.f32.mrb[0].mxu0
        %v535 = vadd.f32 %v361, %v534
        %v536 = vpop.f32.mrb[0].mxu0
        %537 = vmatprep.mubr.bf16.mxu0 0
        %538 = vmatmul.mubr.bf16.gmra.mrb[0].mxu0 %v453
        %v539 = vpop.f32.mrb[0].mxu0
        %v540 = vadd.f32 %v361, %v539
        %v541 = vpop.f32.mrb[0].mxu0
        %v542 = vpop.f32.mrb[0].mxu0
        %v543 = vadd.f32 %v361, %v542
        %v544 = vpop.f32.mrb[0].mxu0
        %545 = vmatprep.mubr.bf16.mxu0 0
        %546 = vmatmul.mubr.bf16.gmra.mrb[0].mxu0 %v456
        %v547 = vpop.f32.mrb[0].mxu0
        %v548 = vadd.f32 %v361, %v547
        %v549 = vpop.f32.mrb[0].mxu0
        %v550 = vpop.f32.mrb[0].mxu0
        %v551 = vadd.f32 %v361, %v550
        %v552 = vpop.f32.mrb[0].mxu0
        %553 = vmatprep.mubr.bf16.mxu0 0
        %554 = vmatmul.mubr.bf16.gmra.mrb[0].mxu0 %v459
        %v555 = vpop.f32.mrb[0].mxu0
        %v556 = vadd.f32 %v361, %v555
        %v557 = vpop.f32.mrb[0].mxu0
        %v558 = vpop.f32.mrb[0].mxu0
        %v559 = vadd.f32 %v361, %v558
        %v560 = vpop.f32.mrb[0].mxu0
        %561 = vmatprep.mubr.bf16.mxu0 0
        %562 = vmatmul.mubr.bf16.gmra.mrb[0].mxu0 %v462
        %v563 = vpop.f32.mrb[0].mxu0
        %v564 = vadd.f32 %v361, %v563
        %v565 = vpop.f32.mrb[0].mxu0
        %v566 = vpop.f32.mrb[0].mxu0
        %v567 = vadd.f32 %v361, %v566
        %v568 = vpop.f32.mrb[0].mxu0
        %569 = vmatprep.mubr.bf16.mxu0 0
        %570 = vmatmul.mubr.bf16.gmra.mrb[0].mxu0 %v465
        %v571 = vpop.f32.mrb[0].mxu0
        %v572 = vadd.f32 %v361, %v571
        %v573 = vpop.f32.mrb[0].mxu0
        %v574 = vpop.f32.mrb[0].mxu0
        %v575 = vadd.f32 %v361, %v574
        %v576 = vpop.f32.mrb[0].mxu0
        %577 = vmatprep.mubr.bf16.mxu0 0
        %578 = vmatmul.mubr.bf16.gmra.mrb[0].mxu0 %v468
        %v579 = vpop.f32.mrb[0].mxu0
        %v580 = vadd.f32 %v361, %v579
        %v581 = vpop.f32.mrb[0].mxu0
        %v582 = vpop.f32.mrb[0].mxu0
        %v583 = vadd.f32 %v361, %v582
        %v584 = vpop.f32.mrb[0].mxu0
        %585 = vmatprep.mubr.bf16.mxu0 0
        %586 = vmatmul.mubr.bf16.gmra.mrb[0].mxu0 %v471
        %v587 = vpop.f32.mrb[0].mxu0
        %v588 = vadd.f32 %v361, %v587
        %v589 = vpop.f32.mrb[0].mxu0
        %v590 = vpop.f32.mrb[0].mxu0
        %v591 = vadd.f32 %v361, %v590
        %v592 = vpop.f32.mrb[0].mxu0
        %593 = vmatprep.mubr.bf16.mxu0 0
        %594 = vmatmul.mubr.bf16.gmra.mrb[0].mxu0 %v474
        %v595 = vpop.f32.mrb[0].mxu0
        %v596 = vadd.f32 %v361, %v595
        %v597 = vpop.f32.mrb[0].mxu0
        %v598 = vpop.f32.mrb[0].mxu0
        %v599 = vadd.f32 %v361, %v598
        %v600 = vpop.f32.mrb[0].mxu0
        %601 = vmatprep.mubr.bf16.mxu0 0
        %602 = vmatmul.mubr.bf16.gmra.mrb[0].mxu0 %v477
        %v603 = vpop.f32.mrb[0].mxu0
        %v604 = vadd.f32 %v361, %v603
        %v605 = vpop.f32.mrb[0].mxu0
        %v606 = vpop.f32.mrb[0].mxu0
        %v607 = vadd.f32 %v361, %v606
        %v608 = vpop.f32.mrb[0].mxu0
        %609 = vmatprep.mubr.bf16.mxu0 0
        %610 = vmatmul.mubr.bf16.gmra.mrb[0].mxu0 %v480
        %v611 = vpop.f32.mrb[0].mxu0
        %v612 = vadd.f32 %v361, %v611
        %v613 = vpop.f32.mrb[0].mxu0
        %v614 = vpop.f32.mrb[0].mxu0
        %v615 = vadd.f32 %v361, %v614
        %v616 = vpop.f32.mrb[0].mxu0
        %617 = vmatprep.mubr.bf16.mxu0 0
        %618 = vmatmul.mubr.bf16.gmra.mrb[0].mxu0 %v483
        %v619 = vpop.f32.mrb[0].mxu0
        %v620 = vadd.f32 %v361, %v619
        %v621 = vpop.f32.mrb[0].mxu0
        %v622 = vpop.f32.mrb[0].mxu0
        %v623 = vadd.f32 %v361, %v622
        %v624 = vpop.f32.mrb[0].mxu0
        %625 = vmatprep.mubr.bf16.mxu0 0
        %626 = vmatmul.mubr.bf16.gmra.mrb[0].mxu0 %v486
        %v627 = vpop.f32.mrb[0].mxu0
        %v628 = vadd.f32 %v361, %v627
        %v629 = vpop.f32.mrb[0].mxu0
        %v630 = vpop.f32.mrb[0].mxu0
        %v631 = vadd.f32 %v361, %v630
        %v632 = vpop.f32.mrb[0].mxu0
        %633 = vmatprep.mubr.bf16.mxu0 0
        %634 = vmatmul.mubr.bf16.gmra.mrb[0].mxu0 %v489
        %v635 = vpop.f32.mrb[0].mxu0
        %v636 = vadd.f32 %v361, %v635
        %v637 = vpop.f32.mrb[0].mxu0
        %v638 = vpop.f32.mrb[0].mxu0
        %v639 = vadd.f32 %v361, %v638
        %v640 = vpop.f32.mrb[0].mxu0
        %641 = vmatprep.mubr.bf16.mxu0 0
        %642 = vmatmul.mubr.bf16.gmra.mrb[0].mxu0 %v492
        %v643 = vpop.f32.mrb[0].mxu0
        %v644 = vadd.f32 %v361, %v643
        %v645 = vpop.f32.mrb[0].mxu0
        %v646 = vpop.f32.mrb[0].mxu0
        %v647 = vadd.f32 %v361, %v646
        %v648 = vpop.f32.mrb[0].mxu0
        %649 = vmatprep.mubr.bf16.mxu0 0
        %650 = vmatmul.mubr.bf16.gmra.mrb[0].mxu0 %v495
        %v651 = vpop.f32.mrb[0].mxu0
        %v652 = vadd.f32 %v361, %v651
        %v653 = vpop.f32.mrb[0].mxu0
        %v654 = vpop.f32.mrb[0].mxu0
        %v655 = vadd.f32 %v361, %v654
        %v656 = vpop.f32.mrb[0].mxu0
        %657 = vdwg.mxu0
        %v658 = vmax.f32 %v532, 0.0
        %v659 = vmax.f32 %v535, 0.0
        %v660 = vmax.f32 %v540, 0.0
        %v661 = vmax.f32 %v543, 0.0
        %v662 = vmax.f32 %v548, 0.0
        %v663 = vmax.f32 %v551, 0.0
        %v664 = vmax.f32 %v556, 0.0
        %v665 = vmax.f32 %v559, 0.0
        %v666 = vmax.f32 %v564, 0.0
        %v667 = vmax.f32 %v567, 0.0
        %v668 = vmax.f32 %v572, 0.0
        %v669 = vmax.f32 %v575, 0.0
        %v670 = vmax.f32 %v580, 0.0
        %v671 = vmax.f32 %v583, 0.0
        %v672 = vmax.f32 %v588, 0.0
        %v673 = vmax.f32 %v591, 0.0
        %v674 = vmax.f32 %v596, 0.0
        %v675 = vmax.f32 %v599, 0.0
        %v676 = vmax.f32 %v604, 0.0
        %v677 = vmax.f32 %v607, 0.0
        %v678 = vmax.f32 %v612, 0.0
        %v679 = vmax.f32 %v615, 0.0
        %v680 = vmax.f32 %v620, 0.0
        %v681 = vmax.f32 %v623, 0.0
        %v682 = vmax.f32 %v628, 0.0
        %v683 = vmax.f32 %v631, 0.0
        %v684 = vmax.f32 %v636, 0.0
        %v685 = vmax.f32 %v639, 0.0
        %v686 = vmax.f32 %v644, 0.0
        %v687 = vmax.f32 %v647, 0.0
        %v688 = vmax.f32 %v652, 0.0
        %v689 = vmax.f32 %v655, 0.0
        %v690 = vpack.c.bf16 %v659, %v658
        %v691 = vpack.c.bf16 %v661, %v660
        %v692 = vpack.c.bf16 %v663, %v662
        %v693 = vpack.c.bf16 %v665, %v664
        %v694 = vpack.c.bf16 %v667, %v666
        %v695 = vpack.c.bf16 %v669, %v668
        %v696 = vpack.c.bf16 %v671, %v670
        %v697 = vpack.c.bf16 %v673, %v672
        %v698 = vpack.c.bf16 %v675, %v674
        %v699 = vpack.c.bf16 %v677, %v676
        %v700 = vpack.c.bf16 %v679, %v678
        %v701 = vpack.c.bf16 %v681, %v680
        %v702 = vpack.c.bf16 %v683, %v682
        %v703 = vpack.c.bf16 %v685, %v684
        %v704 = vpack.c.bf16 %v687, %v686
        %v705 = vpack.c.bf16 %v689, %v688
        %v722 = vunpack.c.l.b16 %v274
        %v723 = vunpack.c.l.b16 %v275
        %v724 = vunpack.c.l.b16 %v276
        %v725 = vunpack.c.l.b16 %v277
        %v726 = vunpack.c.l.b16 %v278
        %v727 = vunpack.c.l.b16 %v279
        %v728 = vunpack.c.l.b16 %v280
        %v729 = vunpack.c.l.b16 %v281
        %v730 = vunpack.c.l.b16 %v282
        %v731 = vunpack.c.l.b16 %v283
        %v732 = vunpack.c.l.b16 %v284
        %v733 = vunpack.c.l.b16 %v285
        %v734 = vunpack.c.l.b16 %v286
        %v735 = vunpack.c.l.b16 %v287
        %v736 = vunpack.c.l.b16 %v288
        %v737 = vunpack.c.l.b16 %v289
        %v738 = vpack.c.b16 %v723, %v722
        %v739 = vpack.c.b16 %v725, %v724
        %v740 = vpack.c.b16 %v727, %v726
        %v741 = vpack.c.b16 %v729, %v728
        %v742 = vpack.c.b16 %v731, %v730
        %v743 = vpack.c.b16 %v733, %v732
        %v744 = vpack.c.b16 %v735, %v734
        %v745 = vpack.c.b16 %v737, %v736
        %754 = vmatprep.subr.bf16.mxu0 0
        %755 = vmatpush1.bf16.msra.mxu0 %v738
        %756 = vmatprep.subr.bf16.mxu0 0
        %757 = vmatpush1.bf16.msra.mxu0 %v739
        %758 = vmatprep.subr.bf16.mxu0 0
        %759 = vmatpush1.bf16.msra.mxu0 %v740
        %760 = vmatprep.subr.bf16.mxu0 0
        %761 = vmatpush1.bf16.msra.mxu0 %v741
        %762 = vmatprep.subr.bf16.mxu0 0
        %763 = vmatpush1.bf16.msra.mxu0 %v742
        %764 = vmatprep.subr.bf16.mxu0 0
        %765 = vmatpush1.bf16.msra.mxu0 %v743
        %766 = vmatprep.subr.bf16.mxu0 0
        %767 = vmatpush1.bf16.msra.mxu0 %v744
        %768 = vmatprep.subr.bf16.mxu0 0
        %769 = vmatpush1.bf16.msra.mxu0 %v745
        %770 = vmatprep.subr.bf16.mxu0 0
        %771 = vmatpush1.bf16.msra.mxu0 0
        %772 = vmatprep.subr.bf16.mxu0 0
        %773 = vmatpush1.bf16.msra.mxu0 0
        %774 = vmatprep.subr.bf16.mxu0 0
        %775 = vmatpush1.bf16.msra.mxu0 0
        %776 = vmatprep.subr.bf16.mxu0 0
        %777 = vmatpush1.bf16.msra.mxu0 0
        %778 = vmatprep.subr.bf16.mxu0 0
        %779 = vmatpush1.bf16.msra.mxu0 0
        %780 = vmatprep.subr.bf16.mxu0 0
        %781 = vmatpush1.bf16.msra.mxu0 0
        %782 = vmatprep.subr.bf16.mxu0 0
        %783 = vmatpush1.bf16.msra.mxu0 0
        %784 = vmatprep.subr.bf16.mxu0 0
        %785 = vmatpush1.bf16.msra.mxu0 0
        %786 = vmatprep.mubr.bf16.mxu0 0
        %787 = vmatmul.mubr.bf16.gmra.mrb[0].mxu0 %v690
        %v788 = vpop.f32.mrb[0].mxu0
        %v789 = vadd.f32 0.0, %v788
        %v790 = vpop.f32.mrb[0].mxu0
        %v791 = vpop.f32.mrb[0].mxu0
        %v792 = vadd.f32 0.0, %v791
        %v793 = vpop.f32.mrb[0].mxu0
        %794 = vmatprep.mubr.bf16.mxu0 0
        %795 = vmatmul.mubr.bf16.gmra.mrb[0].mxu0 %v691
        %v796 = vpop.f32.mrb[0].mxu0
        %v797 = vadd.f32 0.0, %v796
        %v798 = vpop.f32.mrb[0].mxu0
        %v799 = vpop.f32.mrb[0].mxu0
        %v800 = vadd.f32 0.0, %v799
        %v801 = vpop.f32.mrb[0].mxu0
        %802 = vmatprep.mubr.bf16.mxu0 0
        %803 = vmatmul.mubr.bf16.gmra.mrb[0].mxu0 %v692
        %v804 = vpop.f32.mrb[0].mxu0
        %v805 = vadd.f32 0.0, %v804
        %v806 = vpop.f32.mrb[0].mxu0
        %v807 = vpop.f32.mrb[0].mxu0
        %v808 = vadd.f32 0.0, %v807
        %v809 = vpop.f32.mrb[0].mxu0
        %810 = vmatprep.mubr.bf16.mxu0 0
        %811 = vmatmul.mubr.bf16.gmra.mrb[0].mxu0 %v693
        %v812 = vpop.f32.mrb[0].mxu0
        %v813 = vadd.f32 0.0, %v812
        %v814 = vpop.f32.mrb[0].mxu0
        %v815 = vpop.f32.mrb[0].mxu0
        %v816 = vadd.f32 0.0, %v815
        %v817 = vpop.f32.mrb[0].mxu0
        %818 = vmatprep.mubr.bf16.mxu0 0
        %819 = vmatmul.mubr.bf16.gmra.mrb[0].mxu0 %v694
        %v820 = vpop.f32.mrb[0].mxu0
        %v821 = vadd.f32 0.0, %v820
        %v822 = vpop.f32.mrb[0].mxu0
        %v823 = vpop.f32.mrb[0].mxu0
        %v824 = vadd.f32 0.0, %v823
        %v825 = vpop.f32.mrb[0].mxu0
        %826 = vmatprep.mubr.bf16.mxu0 0
        %827 = vmatmul.mubr.bf16.gmra.mrb[0].mxu0 %v695
        %v828 = vpop.f32.mrb[0].mxu0
        %v829 = vadd.f32 0.0, %v828
        %v830 = vpop.f32.mrb[0].mxu0
        %v831 = vpop.f32.mrb[0].mxu0
        %v832 = vadd.f32 0.0, %v831
        %v833 = vpop.f32.mrb[0].mxu0
        %834 = vmatprep.mubr.bf16.mxu0 0
        %835 = vmatmul.mubr.bf16.gmra.mrb[0].mxu0 %v696
        %v836 = vpop.f32.mrb[0].mxu0
        %v837 = vadd.f32 0.0, %v836
        %v838 = vpop.f32.mrb[0].mxu0
        %v839 = vpop.f32.mrb[0].mxu0
        %v840 = vadd.f32 0.0, %v839
        %v841 = vpop.f32.mrb[0].mxu0
        %842 = vmatprep.mubr.bf16.mxu0 0
        %843 = vmatmul.mubr.bf16.gmra.mrb[0].mxu0 %v697
        %v844 = vpop.f32.mrb[0].mxu0
        %v845 = vadd.f32 0.0, %v844
        %v846 = vpop.f32.mrb[0].mxu0
        %v847 = vpop.f32.mrb[0].mxu0
        %v848 = vadd.f32 0.0, %v847
        %v849 = vpop.f32.mrb[0].mxu0
        %850 = vmatprep.mubr.bf16.mxu0 0
        %851 = vmatmul.mubr.bf16.gmra.mrb[0].mxu0 %v698
        %v852 = vpop.f32.mrb[0].mxu0
        %v853 = vadd.f32 0.0, %v852
        %v854 = vpop.f32.mrb[0].mxu0
        %v855 = vpop.f32.mrb[0].mxu0
        %v856 = vadd.f32 0.0, %v855
        %v857 = vpop.f32.mrb[0].mxu0
        %858 = vmatprep.mubr.bf16.mxu0 0
        %859 = vmatmul.mubr.bf16.gmra.mrb[0].mxu0 %v699
        %v860 = vpop.f32.mrb[0].mxu0
        %v861 = vadd.f32 0.0, %v860
        %v862 = vpop.f32.mrb[0].mxu0
        %v863 = vpop.f32.mrb[0].mxu0
        %v864 = vadd.f32 0.0, %v863
        %v865 = vpop.f32.mrb[0].mxu0
        %866 = vmatprep.mubr.bf16.mxu0 0
        %867 = vmatmul.mubr.bf16.gmra.mrb[0].mxu0 %v700
        %v868 = vpop.f32.mrb[0].mxu0
        %v869 = vadd.f32 0.0, %v868
        %v870 = vpop.f32.mrb[0].mxu0
        %v871 = vpop.f32.mrb[0].mxu0
        %v872 = vadd.f32 0.0, %v871
        %v873 = vpop.f32.mrb[0].mxu0
        %874 = vmatprep.mubr.bf16.mxu0 0
        %875 = vmatmul.mubr.bf16.gmra.mrb[0].mxu0 %v701
        %v876 = vpop.f32.mrb[0].mxu0
        %v877 = vadd.f32 0.0, %v876
        %v878 = vpop.f32.mrb[0].mxu0
        %v879 = vpop.f32.mrb[0].mxu0
        %v880 = vadd.f32 0.0, %v879
        %v881 = vpop.f32.mrb[0].mxu0
        %882 = vmatprep.mubr.bf16.mxu0 0
        %883 = vmatmul.mubr.bf16.gmra.mrb[0].mxu0 %v702
        %v884 = vpop.f32.mrb[0].mxu0
        %v885 = vadd.f32 0.0, %v884
        %v886 = vpop.f32.mrb[0].mxu0
        %v887 = vpop.f32.mrb[0].mxu0
        %v888 = vadd.f32 0.0, %v887
        %v889 = vpop.f32.mrb[0].mxu0
        %890 = vmatprep.mubr.bf16.mxu0 0
        %891 = vmatmul.mubr.bf16.gmra.mrb[0].mxu0 %v703
        %v892 = vpop.f32.mrb[0].mxu0
        %v893 = vadd.f32 0.0, %v892
        %v894 = vpop.f32.mrb[0].mxu0
        %v895 = vpop.f32.mrb[0].mxu0
        %v896 = vadd.f32 0.0, %v895
        %v897 = vpop.f32.mrb[0].mxu0
        %898 = vmatprep.mubr.bf16.mxu0 0
        %899 = vmatmul.mubr.bf16.gmra.mrb[0].mxu0 %v704
        %v900 = vpop.f32.mrb[0].mxu0
        %v901 = vadd.f32 0.0, %v900
        %v902 = vpop.f32.mrb[0].mxu0
        %v903 = vpop.f32.mrb[0].mxu0
        %v904 = vadd.f32 0.0, %v903
        %v905 = vpop.f32.mrb[0].mxu0
        %906 = vmatprep.mubr.bf16.mxu0 0
        %907 = vmatmul.mubr.bf16.gmra.mrb[0].mxu0 %v705
        %v908 = vpop.f32.mrb[0].mxu0
        %v909 = vadd.f32 0.0, %v908
        %v910 = vpop.f32.mrb[0].mxu0
        %v911 = vpop.f32.mrb[0].mxu0
        %v912 = vadd.f32 0.0, %v911
        %v913 = vpop.f32.mrb[0].mxu0
        %914 = vdwg.mxu0
        %v915 = vpack.c.bf16 %v792, %v789
        %v916 = vpack.c.bf16 %v800, %v797
        %v917 = vpack.c.bf16 %v808, %v805
        %v918 = vpack.c.bf16 %v816, %v813
        %v919 = vpack.c.bf16 %v824, %v821
        %v920 = vpack.c.bf16 %v832, %v829
        %v921 = vpack.c.bf16 %v840, %v837
        %v922 = vpack.c.bf16 %v848, %v845
        %v923 = vpack.c.bf16 %v856, %v853
        %v924 = vpack.c.bf16 %v864, %v861
        %v925 = vpack.c.bf16 %v872, %v869
        %v926 = vpack.c.bf16 %v880, %v877
        %v927 = vpack.c.bf16 %v888, %v885
        %v928 = vpack.c.bf16 %v896, %v893
        %v929 = vpack.c.bf16 %v904, %v901
        %v930 = vpack.c.bf16 %v912, %v909
        %v931 = vlaneseq
        %v932 = vshrl.u32 %v931, 7
        %v933 = vsub.s32 0, %v932
        %v934 = vrot.slane %v323, %v933
        %v967 = vunpack.c.l.b16 %v240
        %v968 = vunpack.c.h.b16 %v240
        %v969 = vunpack.c.l.b16 %v241
        %v970 = vunpack.c.h.b16 %v241
        %v971 = vunpack.c.l.b16 %v242
        %v972 = vunpack.c.h.b16 %v242
        %v973 = vunpack.c.l.b16 %v243
        %v974 = vunpack.c.h.b16 %v243
        %v975 = vunpack.c.l.b16 %v244
        %v976 = vunpack.c.h.b16 %v244
        %v977 = vunpack.c.l.b16 %v245
        %v978 = vunpack.c.h.b16 %v245
        %v979 = vunpack.c.l.b16 %v246
        %v980 = vunpack.c.h.b16 %v246
        %v981 = vunpack.c.l.b16 %v247
        %v982 = vunpack.c.h.b16 %v247
        %v983 = vunpack.c.l.b16 %v248
        %v984 = vunpack.c.h.b16 %v248
        %v985 = vunpack.c.l.b16 %v249
        %v986 = vunpack.c.h.b16 %v249
        %v987 = vunpack.c.l.b16 %v250
        %v988 = vunpack.c.h.b16 %v250
        %v989 = vunpack.c.l.b16 %v251
        %v990 = vunpack.c.h.b16 %v251
        %v991 = vunpack.c.l.b16 %v252
        %v992 = vunpack.c.h.b16 %v252
        %v993 = vunpack.c.l.b16 %v253
        %v994 = vunpack.c.h.b16 %v253
        %v995 = vunpack.c.l.b16 %v254
        %v996 = vunpack.c.h.b16 %v254
        %v997 = vunpack.c.l.b16 %v255
        %v998 = vunpack.c.h.b16 %v255
        %v999 = vunpack.c.l.b16 %v256
        %v1000 = vunpack.c.h.b16 %v256
        %v1001 = vunpack.c.l.b16 %v257
        %v1002 = vunpack.c.h.b16 %v257
        %v1003 = vunpack.c.l.b16 %v258
        %v1004 = vunpack.c.h.b16 %v258
        %v1005 = vunpack.c.l.b16 %v259
        %v1006 = vunpack.c.h.b16 %v259
        %v1007 = vunpack.c.l.b16 %v260
        %v1008 = vunpack.c.h.b16 %v260
        %v1009 = vunpack.c.l.b16 %v261
        %v1010 = vunpack.c.h.b16 %v261
        %v1011 = vunpack.c.l.b16 %v262
        %v1012 = vunpack.c.h.b16 %v262
        %v1013 = vunpack.c.l.b16 %v263
        %v1014 = vunpack.c.h.b16 %v263
        %v1015 = vunpack.c.l.b16 %v264
        %v1016 = vunpack.c.h.b16 %v264
        %v1017 = vunpack.c.l.b16 %v265
        %v1018 = vunpack.c.h.b16 %v265
        %v1019 = vunpack.c.l.b16 %v266
        %v1020 = vunpack.c.h.b16 %v266
        %v1021 = vunpack.c.l.b16 %v267
        %v1022 = vunpack.c.h.b16 %v267
        %v1023 = vunpack.c.l.b16 %v268
        %v1024 = vunpack.c.h.b16 %v268
        %v1025 = vunpack.c.l.b16 %v269
        %v1026 = vunpack.c.h.b16 %v269
        %v1027 = vunpack.c.l.b16 %v270
        %v1028 = vunpack.c.h.b16 %v270
        %v1029 = vunpack.c.l.b16 %v271
        %v1030 = vunpack.c.h.b16 %v271
        %v1031 = vpack.c.b16 %v969, %v967
        %v1032 = vpack.c.b16 %v970, %v968
        %v1033 = vpack.c.b16 %v973, %v971
        %v1034 = vpack.c.b16 %v974, %v972
        %v1035 = vpack.c.b16 %v977, %v975
        %v1036 = vpack.c.b16 %v978, %v976
        %v1037 = vpack.c.b16 %v981, %v979
        %v1038 = vpack.c.b16 %v982, %v980
        %v1039 = vpack.c.b16 %v985, %v983
        %v1040 = vpack.c.b16 %v986, %v984
        %v1041 = vpack.c.b16 %v989, %v987
        %v1042 = vpack.c.b16 %v990, %v988
        %v1043 = vpack.c.b16 %v993, %v991
        %v1044 = vpack.c.b16 %v994, %v992
        %v1045 = vpack.c.b16 %v997, %v995
        %v1046 = vpack.c.b16 %v998, %v996
        %v1047 = vpack.c.b16 %v1001, %v999
        %v1048 = vpack.c.b16 %v1002, %v1000
        %v1049 = vpack.c.b16 %v1005, %v1003
        %v1050 = vpack.c.b16 %v1006, %v1004
        %v1051 = vpack.c.b16 %v1009, %v1007
        %v1052 = vpack.c.b16 %v1010, %v1008
        %v1053 = vpack.c.b16 %v1013, %v1011
        %v1054 = vpack.c.b16 %v1014, %v1012
        %v1055 = vpack.c.b16 %v1017, %v1015
        %v1056 = vpack.c.b16 %v1018, %v1016
        %v1057 = vpack.c.b16 %v1021, %v1019
        %v1058 = vpack.c.b16 %v1022, %v1020
        %v1059 = vpack.c.b16 %v1025, %v1023
        %v1060 = vpack.c.b16 %v1026, %v1024
        %v1061 = vpack.c.b16 %v1029, %v1027
        %v1062 = vpack.c.b16 %v1030, %v1028
        %1095 = vmatprep.subr.bf16.mxu0 0
        %1096 = vmatpush1.bf16.msra.mxu0 %v915
        %1097 = vmatprep.subr.bf16.mxu0 0
        %1098 = vmatpush1.bf16.msra.mxu0 %v916
        %1099 = vmatprep.subr.bf16.mxu0 0
        %1100 = vmatpush1.bf16.msra.mxu0 %v917
        %1101 = vmatprep.subr.bf16.mxu0 0
        %1102 = vmatpush1.bf16.msra.mxu0 %v918
        %1103 = vmatprep.subr.bf16.mxu0 0
        %1104 = vmatpush1.bf16.msra.mxu0 %v919
        %1105 = vmatprep.subr.bf16.mxu0 0
        %1106 = vmatpush1.bf16.msra.mxu0 %v920
        %1107 = vmatprep.subr.bf16.mxu0 0
        %1108 = vmatpush1.bf16.msra.mxu0 %v921
        %1109 = vmatprep.subr.bf16.mxu0 0
        %1110 = vmatpush1.bf16.msra.mxu0 %v922
        %1111 = vmatprep.subr.bf16.mxu0 0
        %1112 = vmatpush1.bf16.msra.mxu0 %v923
        %1113 = vmatprep.subr.bf16.mxu0 0
        %1114 = vmatpush1.bf16.msra.mxu0 %v924
        %1115 = vmatprep.subr.bf16.mxu0 0
        %1116 = vmatpush1.bf16.msra.mxu0 %v925
        %1117 = vmatprep.subr.bf16.mxu0 0
        %1118 = vmatpush1.bf16.msra.mxu0 %v926
        %1119 = vmatprep.subr.bf16.mxu0 0
        %1120 = vmatpush1.bf16.msra.mxu0 %v927
        %1121 = vmatprep.subr.bf16.mxu0 0
        %1122 = vmatpush1.bf16.msra.mxu0 %v928
        %1123 = vmatprep.subr.bf16.mxu0 0
        %1124 = vmatpush1.bf16.msra.mxu0 %v929
        %1125 = vmatprep.subr.bf16.mxu0 0
        %1126 = vmatpush1.bf16.msra.mxu0 %v930
        %1127 = vmatprep.mubr.bf16.mxu0 %v1032
        %1128 = vmatmul.mubr.bf16.gmra.mrb[0].mxu0 %v1031
        %v1129 = vpop.f32.mrb[0].mxu0
        %v1130 = vadd.f32 %v934, %v1129
        %v1131 = vpop.f32.mrb[0].mxu0
        %v1132 = vpop.f32.mrb[0].mxu0
        %v1133 = vadd.f32 %v934, %v1132
        %v1134 = vpop.f32.mrb[0].mxu0
        %1135 = vmatprep.mubr.bf16.mxu0 %v1034
        %1136 = vmatmul.mubr.bf16.gmra.mrb[0].mxu0 %v1033
        %v1137 = vpop.f32.mrb[0].mxu0
        %v1138 = vadd.f32 %v934, %v1137
        %v1139 = vpop.f32.mrb[0].mxu0
        %v1140 = vpop.f32.mrb[0].mxu0
        %v1141 = vadd.f32 %v934, %v1140
        %v1142 = vpop.f32.mrb[0].mxu0
        %1143 = vmatprep.mubr.bf16.mxu0 %v1036
        %1144 = vmatmul.mubr.bf16.gmra.mrb[0].mxu0 %v1035
        %v1145 = vpop.f32.mrb[0].mxu0
        %v1146 = vadd.f32 %v934, %v1145
        %v1147 = vpop.f32.mrb[0].mxu0
        %v1148 = vpop.f32.mrb[0].mxu0
        %v1149 = vadd.f32 %v934, %v1148
        %v1150 = vpop.f32.mrb[0].mxu0
        %1151 = vmatprep.mubr.bf16.mxu0 %v1038
        %1152 = vmatmul.mubr.bf16.gmra.mrb[0].mxu0 %v1037
        %v1153 = vpop.f32.mrb[0].mxu0
        %v1154 = vadd.f32 %v934, %v1153
        %v1155 = vpop.f32.mrb[0].mxu0
        %v1156 = vpop.f32.mrb[0].mxu0
        %v1157 = vadd.f32 %v934, %v1156
        %v1158 = vpop.f32.mrb[0].mxu0
        %1159 = vmatprep.mubr.bf16.mxu0 %v1040
        %1160 = vmatmul.mubr.bf16.gmra.mrb[0].mxu0 %v1039
        %v1161 = vpop.f32.mrb[0].mxu0
        %v1162 = vadd.f32 %v934, %v1161
        %v1163 = vpop.f32.mrb[0].mxu0
        %v1164 = vpop.f32.mrb[0].mxu0
        %v1165 = vadd.f32 %v934, %v1164
        %v1166 = vpop.f32.mrb[0].mxu0
        %1167 = vmatprep.mubr.bf16.mxu0 %v1042
        %1168 = vmatmul.mubr.bf16.gmra.mrb[0].mxu0 %v1041
        %v1169 = vpop.f32.mrb[0].mxu0
        %v1170 = vadd.f32 %v934, %v1169
        %v1171 = vpop.f32.mrb[0].mxu0
        %v1172 = vpop.f32.mrb[0].mxu0
        %v1173 = vadd.f32 %v934, %v1172
        %v1174 = vpop.f32.mrb[0].mxu0
        %1175 = vmatprep.mubr.bf16.mxu0 %v1044
        %1176 = vmatmul.mubr.bf16.gmra.mrb[0].mxu0 %v1043
        %v1177 = vpop.f32.mrb[0].mxu0
        %v1178 = vadd.f32 %v934, %v1177
        %v1179 = vpop.f32.mrb[0].mxu0
        %v1180 = vpop.f32.mrb[0].mxu0
        %v1181 = vadd.f32 %v934, %v1180
        %v1182 = vpop.f32.mrb[0].mxu0
        %1183 = vmatprep.mubr.bf16.mxu0 %v1046
        %1184 = vmatmul.mubr.bf16.gmra.mrb[0].mxu0 %v1045
        %v1185 = vpop.f32.mrb[0].mxu0
        %v1186 = vadd.f32 %v934, %v1185
        %v1187 = vpop.f32.mrb[0].mxu0
        %v1188 = vpop.f32.mrb[0].mxu0
        %v1189 = vadd.f32 %v934, %v1188
        %v1190 = vpop.f32.mrb[0].mxu0
        %1191 = vmatprep.mubr.bf16.mxu0 %v1048
        %1192 = vmatmul.mubr.bf16.gmra.mrb[0].mxu0 %v1047
        %v1193 = vpop.f32.mrb[0].mxu0
        %v1194 = vadd.f32 %v934, %v1193
        %v1195 = vpop.f32.mrb[0].mxu0
        %v1196 = vpop.f32.mrb[0].mxu0
        %v1197 = vadd.f32 %v934, %v1196
        %v1198 = vpop.f32.mrb[0].mxu0
        %1199 = vmatprep.mubr.bf16.mxu0 %v1050
        %1200 = vmatmul.mubr.bf16.gmra.mrb[0].mxu0 %v1049
        %v1201 = vpop.f32.mrb[0].mxu0
        %v1202 = vadd.f32 %v934, %v1201
        %v1203 = vpop.f32.mrb[0].mxu0
        %v1204 = vpop.f32.mrb[0].mxu0
        %v1205 = vadd.f32 %v934, %v1204
        %v1206 = vpop.f32.mrb[0].mxu0
        %1207 = vmatprep.mubr.bf16.mxu0 %v1052
        %1208 = vmatmul.mubr.bf16.gmra.mrb[0].mxu0 %v1051
        %v1209 = vpop.f32.mrb[0].mxu0
        %v1210 = vadd.f32 %v934, %v1209
        %v1211 = vpop.f32.mrb[0].mxu0
        %v1212 = vpop.f32.mrb[0].mxu0
        %v1213 = vadd.f32 %v934, %v1212
        %v1214 = vpop.f32.mrb[0].mxu0
        %1215 = vmatprep.mubr.bf16.mxu0 %v1054
        %1216 = vmatmul.mubr.bf16.gmra.mrb[0].mxu0 %v1053
        %v1217 = vpop.f32.mrb[0].mxu0
        %v1218 = vadd.f32 %v934, %v1217
        %v1219 = vpop.f32.mrb[0].mxu0
        %v1220 = vpop.f32.mrb[0].mxu0
        %v1221 = vadd.f32 %v934, %v1220
        %v1222 = vpop.f32.mrb[0].mxu0
        %1223 = vmatprep.mubr.bf16.mxu0 %v1056
        %1224 = vmatmul.mubr.bf16.gmra.mrb[0].mxu0 %v1055
        %v1225 = vpop.f32.mrb[0].mxu0
        %v1226 = vadd.f32 %v934, %v1225
        %v1227 = vpop.f32.mrb[0].mxu0
        %v1228 = vpop.f32.mrb[0].mxu0
        %v1229 = vadd.f32 %v934, %v1228
        %v1230 = vpop.f32.mrb[0].mxu0
        %1231 = vmatprep.mubr.bf16.mxu0 %v1058
        %1232 = vmatmul.mubr.bf16.gmra.mrb[0].mxu0 %v1057
        %v1233 = vpop.f32.mrb[0].mxu0
        %v1234 = vadd.f32 %v934, %v1233
        %v1235 = vpop.f32.mrb[0].mxu0
        %v1236 = vpop.f32.mrb[0].mxu0
        %v1237 = vadd.f32 %v934, %v1236
        %v1238 = vpop.f32.mrb[0].mxu0
        %1239 = vmatprep.mubr.bf16.mxu0 %v1060
        %1240 = vmatmul.mubr.bf16.gmra.mrb[0].mxu0 %v1059
        %v1241 = vpop.f32.mrb[0].mxu0
        %v1242 = vadd.f32 %v934, %v1241
        %v1243 = vpop.f32.mrb[0].mxu0
        %v1244 = vpop.f32.mrb[0].mxu0
        %v1245 = vadd.f32 %v934, %v1244
        %v1246 = vpop.f32.mrb[0].mxu0
        %1247 = vmatprep.mubr.bf16.mxu0 %v1062
        %1248 = vmatmul.mubr.bf16.gmra.mrb[0].mxu0 %v1061
        %v1249 = vpop.f32.mrb[0].mxu0
        %v1250 = vadd.f32 %v934, %v1249
        %v1251 = vpop.f32.mrb[0].mxu0
        %v1252 = vpop.f32.mrb[0].mxu0
        %v1253 = vadd.f32 %v934, %v1252
        %v1254 = vpop.f32.mrb[0].mxu0
        %1255 = vdwg.mxu0
        %v1256 = vmax.f32 %v1130, 0.0
        %v1257 = vmax.f32 %v1133, 0.0
        %v1258 = vmax.f32 %v1138, 0.0
        %v1259 = vmax.f32 %v1141, 0.0
        %v1260 = vmax.f32 %v1146, 0.0
        %v1261 = vmax.f32 %v1149, 0.0
        %v1262 = vmax.f32 %v1154, 0.0
        %v1263 = vmax.f32 %v1157, 0.0
        %v1264 = vmax.f32 %v1162, 0.0
        %v1265 = vmax.f32 %v1165, 0.0
        %v1266 = vmax.f32 %v1170, 0.0
        %v1267 = vmax.f32 %v1173, 0.0
        %v1268 = vmax.f32 %v1178, 0.0
        %v1269 = vmax.f32 %v1181, 0.0
        %v1270 = vmax.f32 %v1186, 0.0
        %v1271 = vmax.f32 %v1189, 0.0
        %v1272 = vmax.f32 %v1194, 0.0
        %v1273 = vmax.f32 %v1197, 0.0
        %v1274 = vmax.f32 %v1202, 0.0
        %v1275 = vmax.f32 %v1205, 0.0
        %v1276 = vmax.f32 %v1210, 0.0
        %v1277 = vmax.f32 %v1213, 0.0
        %v1278 = vmax.f32 %v1218, 0.0
        %v1279 = vmax.f32 %v1221, 0.0
        %v1280 = vmax.f32 %v1226, 0.0
        %v1281 = vmax.f32 %v1229, 0.0
        %v1282 = vmax.f32 %v1234, 0.0
        %v1283 = vmax.f32 %v1237, 0.0
        %v1284 = vmax.f32 %v1242, 0.0
        %v1285 = vmax.f32 %v1245, 0.0
        %v1286 = vmax.f32 %v1250, 0.0
        %v1287 = vmax.f32 %v1253, 0.0
        %v1288 = vpack.c.bf16 %v1257, %v1256
        %v1289 = vpack.c.bf16 %v1259, %v1258
        %v1290 = vpack.c.bf16 %v1261, %v1260
        %v1291 = vpack.c.bf16 %v1263, %v1262
        %v1292 = vpack.c.bf16 %v1265, %v1264
        %v1293 = vpack.c.bf16 %v1267, %v1266
        %v1294 = vpack.c.bf16 %v1269, %v1268
        %v1295 = vpack.c.bf16 %v1271, %v1270
        %v1296 = vpack.c.bf16 %v1273, %v1272
        %v1297 = vpack.c.bf16 %v1275, %v1274
        %v1298 = vpack.c.bf16 %v1277, %v1276
        %v1299 = vpack.c.bf16 %v1279, %v1278
        %v1300 = vpack.c.bf16 %v1281, %v1280
        %v1301 = vpack.c.bf16 %v1283, %v1282
        %v1302 = vpack.c.bf16 %v1285, %v1284
        %v1303 = vpack.c.bf16 %v1287, %v1286
        %v1320 = vunpack.c.l.b16 %v290
        %v1321 = vunpack.c.l.b16 %v291
        %v1322 = vunpack.c.l.b16 %v292
        %v1323 = vunpack.c.l.b16 %v293
        %v1324 = vunpack.c.l.b16 %v294
        %v1325 = vunpack.c.l.b16 %v295
        %v1326 = vunpack.c.l.b16 %v296
        %v1327 = vunpack.c.l.b16 %v297
        %v1328 = vunpack.c.l.b16 %v298
        %v1329 = vunpack.c.l.b16 %v299
        %v1330 = vunpack.c.l.b16 %v300
        %v1331 = vunpack.c.l.b16 %v301
        %v1332 = vunpack.c.l.b16 %v302
        %v1333 = vunpack.c.l.b16 %v303
        %v1334 = vunpack.c.l.b16 %v304
        %v1335 = vunpack.c.l.b16 %v305
        %v1336 = vpack.c.b16 %v1321, %v1320
        %v1337 = vpack.c.b16 %v1323, %v1322
        %v1338 = vpack.c.b16 %v1325, %v1324
        %v1339 = vpack.c.b16 %v1327, %v1326
        %v1340 = vpack.c.b16 %v1329, %v1328
        %v1341 = vpack.c.b16 %v1331, %v1330
        %v1342 = vpack.c.b16 %v1333, %v1332
        %v1343 = vpack.c.b16 %v1335, %v1334
        %1352 = vmatprep.subr.bf16.mxu0 0
        %1353 = vmatpush1.bf16.msra.mxu0 %v1336
        %1354 = vmatprep.subr.bf16.mxu0 0
        %1355 = vmatpush1.bf16.msra.mxu0 %v1337
        %1356 = vmatprep.subr.bf16.mxu0 0
        %1357 = vmatpush1.bf16.msra.mxu0 %v1338
        %1358 = vmatprep.subr.bf16.mxu0 0
        %1359 = vmatpush1.bf16.msra.mxu0 %v1339
        %1360 = vmatprep.subr.bf16.mxu0 0
        %1361 = vmatpush1.bf16.msra.mxu0 %v1340
        %1362 = vmatprep.subr.bf16.mxu0 0
        %1363 = vmatpush1.bf16.msra.mxu0 %v1341
        %1364 = vmatprep.subr.bf16.mxu0 0
        %1365 = vmatpush1.bf16.msra.mxu0 %v1342
        %1366 = vmatprep.subr.bf16.mxu0 0
        %1367 = vmatpush1.bf16.msra.mxu0 %v1343
        %1368 = vmatprep.subr.bf16.mxu0 0
        %1369 = vmatpush1.bf16.msra.mxu0 0
        %1370 = vmatprep.subr.bf16.mxu0 0
        %1371 = vmatpush1.bf16.msra.mxu0 0
        %1372 = vmatprep.subr.bf16.mxu0 0
        %1373 = vmatpush1.bf16.msra.mxu0 0
        %1374 = vmatprep.subr.bf16.mxu0 0
        %1375 = vmatpush1.bf16.msra.mxu0 0
        %1376 = vmatprep.subr.bf16.mxu0 0
        %1377 = vmatpush1.bf16.msra.mxu0 0
        %1378 = vmatprep.subr.bf16.mxu0 0
        %1379 = vmatpush1.bf16.msra.mxu0 0
        %1380 = vmatprep.subr.bf16.mxu0 0
        %1381 = vmatpush1.bf16.msra.mxu0 0
        %1382 = vmatprep.subr.bf16.mxu0 0
        %1383 = vmatpush1.bf16.msra.mxu0 0
        %1384 = vmatprep.mubr.bf16.mxu0 0
        %1385 = vmatmul.mubr.bf16.gmra.mrb[0].mxu0 %v1288
        %v1386 = vpop.f32.mrb[0].mxu0
        %v1387 = vadd.f32 0.0, %v1386
        %v1388 = vpop.f32.mrb[0].mxu0
        %v1389 = vpop.f32.mrb[0].mxu0
        %v1390 = vadd.f32 0.0, %v1389
        %v1391 = vpop.f32.mrb[0].mxu0
        %1392 = vmatprep.mubr.bf16.mxu0 0
        %1393 = vmatmul.mubr.bf16.gmra.mrb[0].mxu0 %v1289
        %v1394 = vpop.f32.mrb[0].mxu0
        %v1395 = vadd.f32 0.0, %v1394
        %v1396 = vpop.f32.mrb[0].mxu0
        %v1397 = vpop.f32.mrb[0].mxu0
        %v1398 = vadd.f32 0.0, %v1397
        %v1399 = vpop.f32.mrb[0].mxu0
        %1400 = vmatprep.mubr.bf16.mxu0 0
        %1401 = vmatmul.mubr.bf16.gmra.mrb[0].mxu0 %v1290
        %v1402 = vpop.f32.mrb[0].mxu0
        %v1403 = vadd.f32 0.0, %v1402
        %v1404 = vpop.f32.mrb[0].mxu0
        %v1405 = vpop.f32.mrb[0].mxu0
        %v1406 = vadd.f32 0.0, %v1405
        %v1407 = vpop.f32.mrb[0].mxu0
        %1408 = vmatprep.mubr.bf16.mxu0 0
        %1409 = vmatmul.mubr.bf16.gmra.mrb[0].mxu0 %v1291
        %v1410 = vpop.f32.mrb[0].mxu0
        %v1411 = vadd.f32 0.0, %v1410
        %v1412 = vpop.f32.mrb[0].mxu0
        %v1413 = vpop.f32.mrb[0].mxu0
        %v1414 = vadd.f32 0.0, %v1413
        %v1415 = vpop.f32.mrb[0].mxu0
        %1416 = vmatprep.mubr.bf16.mxu0 0
        %1417 = vmatmul.mubr.bf16.gmra.mrb[0].mxu0 %v1292
        %v1418 = vpop.f32.mrb[0].mxu0
        %v1419 = vadd.f32 0.0, %v1418
        %v1420 = vpop.f32.mrb[0].mxu0
        %v1421 = vpop.f32.mrb[0].mxu0
        %v1422 = vadd.f32 0.0, %v1421
        %v1423 = vpop.f32.mrb[0].mxu0
        %1424 = vmatprep.mubr.bf16.mxu0 0
        %1425 = vmatmul.mubr.bf16.gmra.mrb[0].mxu0 %v1293
        %v1426 = vpop.f32.mrb[0].mxu0
        %v1427 = vadd.f32 0.0, %v1426
        %v1428 = vpop.f32.mrb[0].mxu0
        %v1429 = vpop.f32.mrb[0].mxu0
        %v1430 = vadd.f32 0.0, %v1429
        %v1431 = vpop.f32.mrb[0].mxu0
        %1432 = vmatprep.mubr.bf16.mxu0 0
        %1433 = vmatmul.mubr.bf16.gmra.mrb[0].mxu0 %v1294
        %v1434 = vpop.f32.mrb[0].mxu0
        %v1435 = vadd.f32 0.0, %v1434
        %v1436 = vpop.f32.mrb[0].mxu0
        %v1437 = vpop.f32.mrb[0].mxu0
        %v1438 = vadd.f32 0.0, %v1437
        %v1439 = vpop.f32.mrb[0].mxu0
        %1440 = vmatprep.mubr.bf16.mxu0 0
        %1441 = vmatmul.mubr.bf16.gmra.mrb[0].mxu0 %v1295
        %v1442 = vpop.f32.mrb[0].mxu0
        %v1443 = vadd.f32 0.0, %v1442
        %v1444 = vpop.f32.mrb[0].mxu0
        %v1445 = vpop.f32.mrb[0].mxu0
        %v1446 = vadd.f32 0.0, %v1445
        %v1447 = vpop.f32.mrb[0].mxu0
        %1448 = vmatprep.mubr.bf16.mxu0 0
        %1449 = vmatmul.mubr.bf16.gmra.mrb[0].mxu0 %v1296
        %v1450 = vpop.f32.mrb[0].mxu0
        %v1451 = vadd.f32 0.0, %v1450
        %v1452 = vpop.f32.mrb[0].mxu0
        %v1453 = vpop.f32.mrb[0].mxu0
        %v1454 = vadd.f32 0.0, %v1453
        %v1455 = vpop.f32.mrb[0].mxu0
        %1456 = vmatprep.mubr.bf16.mxu0 0
        %1457 = vmatmul.mubr.bf16.gmra.mrb[0].mxu0 %v1297
        %v1458 = vpop.f32.mrb[0].mxu0
        %v1459 = vadd.f32 0.0, %v1458
        %v1460 = vpop.f32.mrb[0].mxu0
        %v1461 = vpop.f32.mrb[0].mxu0
        %v1462 = vadd.f32 0.0, %v1461
        %v1463 = vpop.f32.mrb[0].mxu0
        %1464 = vmatprep.mubr.bf16.mxu0 0
        %1465 = vmatmul.mubr.bf16.gmra.mrb[0].mxu0 %v1298
        %v1466 = vpop.f32.mrb[0].mxu0
        %v1467 = vadd.f32 0.0, %v1466
        %v1468 = vpop.f32.mrb[0].mxu0
        %v1469 = vpop.f32.mrb[0].mxu0
        %v1470 = vadd.f32 0.0, %v1469
        %v1471 = vpop.f32.mrb[0].mxu0
        %1472 = vmatprep.mubr.bf16.mxu0 0
        %1473 = vmatmul.mubr.bf16.gmra.mrb[0].mxu0 %v1299
        %v1474 = vpop.f32.mrb[0].mxu0
        %v1475 = vadd.f32 0.0, %v1474
        %v1476 = vpop.f32.mrb[0].mxu0
        %v1477 = vpop.f32.mrb[0].mxu0
        %v1478 = vadd.f32 0.0, %v1477
        %v1479 = vpop.f32.mrb[0].mxu0
        %1480 = vmatprep.mubr.bf16.mxu0 0
        %1481 = vmatmul.mubr.bf16.gmra.mrb[0].mxu0 %v1300
        %v1482 = vpop.f32.mrb[0].mxu0
        %v1483 = vadd.f32 0.0, %v1482
        %v1484 = vpop.f32.mrb[0].mxu0
        %v1485 = vpop.f32.mrb[0].mxu0
        %v1486 = vadd.f32 0.0, %v1485
        %v1487 = vpop.f32.mrb[0].mxu0
        %1488 = vmatprep.mubr.bf16.mxu0 0
        %1489 = vmatmul.mubr.bf16.gmra.mrb[0].mxu0 %v1301
        %v1490 = vpop.f32.mrb[0].mxu0
        %v1491 = vadd.f32 0.0, %v1490
        %v1492 = vpop.f32.mrb[0].mxu0
        %v1493 = vpop.f32.mrb[0].mxu0
        %v1494 = vadd.f32 0.0, %v1493
        %v1495 = vpop.f32.mrb[0].mxu0
        %1496 = vmatprep.mubr.bf16.mxu0 0
        %1497 = vmatmul.mubr.bf16.gmra.mrb[0].mxu0 %v1302
        %v1498 = vpop.f32.mrb[0].mxu0
        %v1499 = vadd.f32 0.0, %v1498
        %v1500 = vpop.f32.mrb[0].mxu0
        %v1501 = vpop.f32.mrb[0].mxu0
        %v1502 = vadd.f32 0.0, %v1501
        %v1503 = vpop.f32.mrb[0].mxu0
        %1504 = vmatprep.mubr.bf16.mxu0 0
        %1505 = vmatmul.mubr.bf16.gmra.mrb[0].mxu0 %v1303
        %v1506 = vpop.f32.mrb[0].mxu0
        %v1507 = vadd.f32 0.0, %v1506
        %v1508 = vpop.f32.mrb[0].mxu0
        %v1509 = vpop.f32.mrb[0].mxu0
        %v1510 = vadd.f32 0.0, %v1509
        %v1511 = vpop.f32.mrb[0].mxu0
        %1512 = vdwg.mxu0
        %v1513 = vpack.c.bf16 %v1390, %v1387
        %v1514 = vpack.c.bf16 %v1398, %v1395
        %v1515 = vpack.c.bf16 %v1406, %v1403
        %v1516 = vpack.c.bf16 %v1414, %v1411
        %v1517 = vpack.c.bf16 %v1422, %v1419
        %v1518 = vpack.c.bf16 %v1430, %v1427
        %v1519 = vpack.c.bf16 %v1438, %v1435
        %v1520 = vpack.c.bf16 %v1446, %v1443
        %v1521 = vpack.c.bf16 %v1454, %v1451
        %v1522 = vpack.c.bf16 %v1462, %v1459
        %v1523 = vpack.c.bf16 %v1470, %v1467
        %v1524 = vpack.c.bf16 %v1478, %v1475
        %v1525 = vpack.c.bf16 %v1486, %v1483
        %v1526 = vpack.c.bf16 %v1494, %v1491
        %v1527 = vpack.c.bf16 %v1502, %v1499
        %v1528 = vpack.c.bf16 %v1510, %v1507
        %v1529 = vlaneseq
        %v1530 = vshrl.u32 %v1529, 7
        %v1531 = vsub.s32 0, %v1530
        %v1532 = vrot.slane %v324, %v1531
        %1533 = vmatprep.subr.bf16.mxu0 0
        %1534 = vmatpush1.bf16.msra.mxu0 %v1513
        %1535 = vmatprep.subr.bf16.mxu0 0
        %1536 = vmatpush1.bf16.msra.mxu0 %v1514
        %1537 = vmatprep.subr.bf16.mxu0 0
        %1538 = vmatpush1.bf16.msra.mxu0 %v1515
        %1539 = vmatprep.subr.bf16.mxu0 0
        %1540 = vmatpush1.bf16.msra.mxu0 %v1516
        %1541 = vmatprep.subr.bf16.mxu0 0
        %1542 = vmatpush1.bf16.msra.mxu0 %v1517
        %1543 = vmatprep.subr.bf16.mxu0 0
        %1544 = vmatpush1.bf16.msra.mxu0 %v1518
        %1545 = vmatprep.subr.bf16.mxu0 0
        %1546 = vmatpush1.bf16.msra.mxu0 %v1519
        %1547 = vmatprep.subr.bf16.mxu0 0
        %1548 = vmatpush1.bf16.msra.mxu0 %v1520
        %1549 = vmatprep.subr.bf16.mxu0 0
        %1550 = vmatpush1.bf16.msra.mxu0 %v1521
        %1551 = vmatprep.subr.bf16.mxu0 0
        %1552 = vmatpush1.bf16.msra.mxu0 %v1522
        %1553 = vmatprep.subr.bf16.mxu0 0
        %1554 = vmatpush1.bf16.msra.mxu0 %v1523
        %1555 = vmatprep.subr.bf16.mxu0 0
        %1556 = vmatpush1.bf16.msra.mxu0 %v1524
        %1557 = vmatprep.subr.bf16.mxu0 0
        %1558 = vmatpush1.bf16.msra.mxu0 %v1525
        %1559 = vmatprep.subr.bf16.mxu0 0
        %1560 = vmatpush1.bf16.msra.mxu0 %v1526
        %1561 = vmatprep.subr.bf16.mxu0 0
        %1562 = vmatpush1.bf16.msra.mxu0 %v1527
        %1563 = vmatprep.subr.bf16.mxu0 0
        %1564 = vmatpush1.bf16.msra.mxu0 %v1528
        %1565 = vmatprep.mubr.bf16.mxu0 %v1032
        %1566 = vmatmul.mubr.bf16.gmra.mrb[0].mxu0 %v1031
        %v1567 = vpop.f32.mrb[0].mxu0
        %v1568 = vadd.f32 %v1532, %v1567
        %v1569 = vpop.f32.mrb[0].mxu0
        %v1570 = vpop.f32.mrb[0].mxu0
        %v1571 = vadd.f32 %v1532, %v1570
        %v1572 = vpop.f32.mrb[0].mxu0
        %1573 = vmatprep.mubr.bf16.mxu0 %v1034
        %1574 = vmatmul.mubr.bf16.gmra.mrb[0].mxu0 %v1033
        %v1575 = vpop.f32.mrb[0].mxu0
        %v1576 = vadd.f32 %v1532, %v1575
        %v1577 = vpop.f32.mrb[0].mxu0
        %v1578 = vpop.f32.mrb[0].mxu0
        %v1579 = vadd.f32 %v1532, %v1578
        %v1580 = vpop.f32.mrb[0].mxu0
        %1581 = vmatprep.mubr.bf16.mxu0 %v1036
        %1582 = vmatmul.mubr.bf16.gmra.mrb[0].mxu0 %v1035
        %v1583 = vpop.f32.mrb[0].mxu0
        %v1584 = vadd.f32 %v1532, %v1583
        %v1585 = vpop.f32.mrb[0].mxu0
        %v1586 = vpop.f32.mrb[0].mxu0
        %v1587 = vadd.f32 %v1532, %v1586
        %v1588 = vpop.f32.mrb[0].mxu0
        %1589 = vmatprep.mubr.bf16.mxu0 %v1038
        %1590 = vmatmul.mubr.bf16.gmra.mrb[0].mxu0 %v1037
        %v1591 = vpop.f32.mrb[0].mxu0
        %v1592 = vadd.f32 %v1532, %v1591
        %v1593 = vpop.f32.mrb[0].mxu0
        %v1594 = vpop.f32.mrb[0].mxu0
        %v1595 = vadd.f32 %v1532, %v1594
        %v1596 = vpop.f32.mrb[0].mxu0
        %1597 = vmatprep.mubr.bf16.mxu0 %v1040
        %1598 = vmatmul.mubr.bf16.gmra.mrb[0].mxu0 %v1039
        %v1599 = vpop.f32.mrb[0].mxu0
        %v1600 = vadd.f32 %v1532, %v1599
        %v1601 = vpop.f32.mrb[0].mxu0
        %v1602 = vpop.f32.mrb[0].mxu0
        %v1603 = vadd.f32 %v1532, %v1602
        %v1604 = vpop.f32.mrb[0].mxu0
        %1605 = vmatprep.mubr.bf16.mxu0 %v1042
        %1606 = vmatmul.mubr.bf16.gmra.mrb[0].mxu0 %v1041
        %v1607 = vpop.f32.mrb[0].mxu0
        %v1608 = vadd.f32 %v1532, %v1607
        %v1609 = vpop.f32.mrb[0].mxu0
        %v1610 = vpop.f32.mrb[0].mxu0
        %v1611 = vadd.f32 %v1532, %v1610
        %v1612 = vpop.f32.mrb[0].mxu0
        %1613 = vmatprep.mubr.bf16.mxu0 %v1044
        %1614 = vmatmul.mubr.bf16.gmra.mrb[0].mxu0 %v1043
        %v1615 = vpop.f32.mrb[0].mxu0
        %v1616 = vadd.f32 %v1532, %v1615
        %v1617 = vpop.f32.mrb[0].mxu0
        %v1618 = vpop.f32.mrb[0].mxu0
        %v1619 = vadd.f32 %v1532, %v1618
        %v1620 = vpop.f32.mrb[0].mxu0
        %1621 = vmatprep.mubr.bf16.mxu0 %v1046
        %1622 = vmatmul.mubr.bf16.gmra.mrb[0].mxu0 %v1045
        %v1623 = vpop.f32.mrb[0].mxu0
        %v1624 = vadd.f32 %v1532, %v1623
        %v1625 = vpop.f32.mrb[0].mxu0
        %v1626 = vpop.f32.mrb[0].mxu0
        %v1627 = vadd.f32 %v1532, %v1626
        %v1628 = vpop.f32.mrb[0].mxu0
        %1629 = vmatprep.mubr.bf16.mxu0 %v1048
        %1630 = vmatmul.mubr.bf16.gmra.mrb[0].mxu0 %v1047
        %v1631 = vpop.f32.mrb[0].mxu0
        %v1632 = vadd.f32 %v1532, %v1631
        %v1633 = vpop.f32.mrb[0].mxu0
        %v1634 = vpop.f32.mrb[0].mxu0
        %v1635 = vadd.f32 %v1532, %v1634
        %v1636 = vpop.f32.mrb[0].mxu0
        %1637 = vmatprep.mubr.bf16.mxu0 %v1050
        %1638 = vmatmul.mubr.bf16.gmra.mrb[0].mxu0 %v1049
        %v1639 = vpop.f32.mrb[0].mxu0
        %v1640 = vadd.f32 %v1532, %v1639
        %v1641 = vpop.f32.mrb[0].mxu0
        %v1642 = vpop.f32.mrb[0].mxu0
        %v1643 = vadd.f32 %v1532, %v1642
        %v1644 = vpop.f32.mrb[0].mxu0
        %1645 = vmatprep.mubr.bf16.mxu0 %v1052
        %1646 = vmatmul.mubr.bf16.gmra.mrb[0].mxu0 %v1051
        %v1647 = vpop.f32.mrb[0].mxu0
        %v1648 = vadd.f32 %v1532, %v1647
        %v1649 = vpop.f32.mrb[0].mxu0
        %v1650 = vpop.f32.mrb[0].mxu0
        %v1651 = vadd.f32 %v1532, %v1650
        %v1652 = vpop.f32.mrb[0].mxu0
        %1653 = vmatprep.mubr.bf16.mxu0 %v1054
        %1654 = vmatmul.mubr.bf16.gmra.mrb[0].mxu0 %v1053
        %v1655 = vpop.f32.mrb[0].mxu0
        %v1656 = vadd.f32 %v1532, %v1655
        %v1657 = vpop.f32.mrb[0].mxu0
        %v1658 = vpop.f32.mrb[0].mxu0
        %v1659 = vadd.f32 %v1532, %v1658
        %v1660 = vpop.f32.mrb[0].mxu0
        %1661 = vmatprep.mubr.bf16.mxu0 %v1056
        %1662 = vmatmul.mubr.bf16.gmra.mrb[0].mxu0 %v1055
        %v1663 = vpop.f32.mrb[0].mxu0
        %v1664 = vadd.f32 %v1532, %v1663
        %v1665 = vpop.f32.mrb[0].mxu0
        %v1666 = vpop.f32.mrb[0].mxu0
        %v1667 = vadd.f32 %v1532, %v1666
        %v1668 = vpop.f32.mrb[0].mxu0
        %1669 = vmatprep.mubr.bf16.mxu0 %v1058
        %1670 = vmatmul.mubr.bf16.gmra.mrb[0].mxu0 %v1057
        %v1671 = vpop.f32.mrb[0].mxu0
        %v1672 = vadd.f32 %v1532, %v1671
        %v1673 = vpop.f32.mrb[0].mxu0
        %v1674 = vpop.f32.mrb[0].mxu0
        %v1675 = vadd.f32 %v1532, %v1674
        %v1676 = vpop.f32.mrb[0].mxu0
        %1677 = vmatprep.mubr.bf16.mxu0 %v1060
        %1678 = vmatmul.mubr.bf16.gmra.mrb[0].mxu0 %v1059
        %v1679 = vpop.f32.mrb[0].mxu0
        %v1680 = vadd.f32 %v1532, %v1679
        %v1681 = vpop.f32.mrb[0].mxu0
        %v1682 = vpop.f32.mrb[0].mxu0
        %v1683 = vadd.f32 %v1532, %v1682
        %v1684 = vpop.f32.mrb[0].mxu0
        %1685 = vmatprep.mubr.bf16.mxu0 %v1062
        %1686 = vmatmul.mubr.bf16.gmra.mrb[0].mxu0 %v1061
        %v1687 = vpop.f32.mrb[0].mxu0
        %v1688 = vadd.f32 %v1532, %v1687
        %v1689 = vpop.f32.mrb[0].mxu0
        %v1690 = vpop.f32.mrb[0].mxu0
        %v1691 = vadd.f32 %v1532, %v1690
        %v1692 = vpop.f32.mrb[0].mxu0
        %1693 = vdwg.mxu0
        %v1694 = vmax.f32 %v1568, 0.0
        %v1695 = vmax.f32 %v1571, 0.0
        %v1696 = vmax.f32 %v1576, 0.0
        %v1697 = vmax.f32 %v1579, 0.0
        %v1698 = vmax.f32 %v1584, 0.0
        %v1699 = vmax.f32 %v1587, 0.0
        %v1700 = vmax.f32 %v1592, 0.0
        %v1701 = vmax.f32 %v1595, 0.0
        %v1702 = vmax.f32 %v1600, 0.0
        %v1703 = vmax.f32 %v1603, 0.0
        %v1704 = vmax.f32 %v1608, 0.0
        %v1705 = vmax.f32 %v1611, 0.0
        %v1706 = vmax.f32 %v1616, 0.0
        %v1707 = vmax.f32 %v1619, 0.0
        %v1708 = vmax.f32 %v1624, 0.0
        %v1709 = vmax.f32 %v1627, 0.0
        %v1710 = vmax.f32 %v1632, 0.0
        %v1711 = vmax.f32 %v1635, 0.0
        %v1712 = vmax.f32 %v1640, 0.0
        %v1713 = vmax.f32 %v1643, 0.0
        %v1714 = vmax.f32 %v1648, 0.0
        %v1715 = vmax.f32 %v1651, 0.0
        %v1716 = vmax.f32 %v1656, 0.0
        %v1717 = vmax.f32 %v1659, 0.0
        %v1718 = vmax.f32 %v1664, 0.0
        %v1719 = vmax.f32 %v1667, 0.0
        %v1720 = vmax.f32 %v1672, 0.0
        %v1721 = vmax.f32 %v1675, 0.0
        %v1722 = vmax.f32 %v1680, 0.0
        %v1723 = vmax.f32 %v1683, 0.0
        %v1724 = vmax.f32 %v1688, 0.0
        %v1725 = vmax.f32 %v1691, 0.0
        %v1726 = vpack.c.bf16 %v1695, %v1694
        %v1727 = vpack.c.bf16 %v1697, %v1696
        %v1728 = vpack.c.bf16 %v1699, %v1698
        %v1729 = vpack.c.bf16 %v1701, %v1700
        %v1730 = vpack.c.bf16 %v1703, %v1702
        %v1731 = vpack.c.bf16 %v1705, %v1704
        %v1732 = vpack.c.bf16 %v1707, %v1706
        %v1733 = vpack.c.bf16 %v1709, %v1708
        %v1734 = vpack.c.bf16 %v1711, %v1710
        %v1735 = vpack.c.bf16 %v1713, %v1712
        %v1736 = vpack.c.bf16 %v1715, %v1714
        %v1737 = vpack.c.bf16 %v1717, %v1716
        %v1738 = vpack.c.bf16 %v1719, %v1718
        %v1739 = vpack.c.bf16 %v1721, %v1720
        %v1740 = vpack.c.bf16 %v1723, %v1722
        %v1741 = vpack.c.bf16 %v1725, %v1724
        %v1758 = vunpack.c.l.b16 %v306
        %v1759 = vunpack.c.l.b16 %v307
        %v1760 = vunpack.c.l.b16 %v308
        %v1761 = vunpack.c.l.b16 %v309
        %v1762 = vunpack.c.l.b16 %v310
        %v1763 = vunpack.c.l.b16 %v311
        %v1764 = vunpack.c.l.b16 %v312
        %v1765 = vunpack.c.l.b16 %v313
        %v1766 = vunpack.c.l.b16 %v314
        %v1767 = vunpack.c.l.b16 %v315
        %v1768 = vunpack.c.l.b16 %v316
        %v1769 = vunpack.c.l.b16 %v317
        %v1770 = vunpack.c.l.b16 %v318
        %v1771 = vunpack.c.l.b16 %v319
        %v1772 = vunpack.c.l.b16 %v320
        %v1773 = vunpack.c.l.b16 %v321
        %v1774 = vpack.c.b16 %v1759, %v1758
        %v1775 = vpack.c.b16 %v1761, %v1760
        %v1776 = vpack.c.b16 %v1763, %v1762
        %v1777 = vpack.c.b16 %v1765, %v1764
        %v1778 = vpack.c.b16 %v1767, %v1766
        %v1779 = vpack.c.b16 %v1769, %v1768
        %v1780 = vpack.c.b16 %v1771, %v1770
        %v1781 = vpack.c.b16 %v1773, %v1772
        %1790 = vmatprep.subr.bf16.mxu0 0
        %1791 = vmatpush1.bf16.msra.mxu0 %v1774
        %1792 = vmatprep.subr.bf16.mxu0 0
        %1793 = vmatpush1.bf16.msra.mxu0 %v1775
        %1794 = vmatprep.subr.bf16.mxu0 0
        %1795 = vmatpush1.bf16.msra.mxu0 %v1776
        %1796 = vmatprep.subr.bf16.mxu0 0
        %1797 = vmatpush1.bf16.msra.mxu0 %v1777
        %1798 = vmatprep.subr.bf16.mxu0 0
        %1799 = vmatpush1.bf16.msra.mxu0 %v1778
        %1800 = vmatprep.subr.bf16.mxu0 0
        %1801 = vmatpush1.bf16.msra.mxu0 %v1779
        %1802 = vmatprep.subr.bf16.mxu0 0
        %1803 = vmatpush1.bf16.msra.mxu0 %v1780
        %1804 = vmatprep.subr.bf16.mxu0 0
        %1805 = vmatpush1.bf16.msra.mxu0 %v1781
        %1806 = vmatprep.subr.bf16.mxu0 0
        %1807 = vmatpush1.bf16.msra.mxu0 0
        %1808 = vmatprep.subr.bf16.mxu0 0
        %1809 = vmatpush1.bf16.msra.mxu0 0
        %1810 = vmatprep.subr.bf16.mxu0 0
        %1811 = vmatpush1.bf16.msra.mxu0 0
        %1812 = vmatprep.subr.bf16.mxu0 0
        %1813 = vmatpush1.bf16.msra.mxu0 0
        %1814 = vmatprep.subr.bf16.mxu0 0
        %1815 = vmatpush1.bf16.msra.mxu0 0
        %1816 = vmatprep.subr.bf16.mxu0 0
        %1817 = vmatpush1.bf16.msra.mxu0 0
        %1818 = vmatprep.subr.bf16.mxu0 0
        %1819 = vmatpush1.bf16.msra.mxu0 0
        %1820 = vmatprep.subr.bf16.mxu0 0
        %1821 = vmatpush1.bf16.msra.mxu0 0
        %1822 = vmatprep.mubr.bf16.mxu0 0
        %1823 = vmatmul.mubr.bf16.gmra.mrb[0].mxu0 %v1726
        %v1824 = vpop.f32.mrb[0].mxu0
        %v1825 = vadd.f32 0.0, %v1824
        %v1826 = vpop.f32.mrb[0].mxu0
        %v1827 = vpop.f32.mrb[0].mxu0
        %v1828 = vadd.f32 0.0, %v1827
        %v1829 = vpop.f32.mrb[0].mxu0
        %1830 = vmatprep.mubr.bf16.mxu0 0
        %1831 = vmatmul.mubr.bf16.gmra.mrb[0].mxu0 %v1727
        %v1832 = vpop.f32.mrb[0].mxu0
        %v1833 = vadd.f32 0.0, %v1832
        %v1834 = vpop.f32.mrb[0].mxu0
        %v1835 = vpop.f32.mrb[0].mxu0
        %v1836 = vadd.f32 0.0, %v1835
        %v1837 = vpop.f32.mrb[0].mxu0
        %1838 = vmatprep.mubr.bf16.mxu0 0
        %1839 = vmatmul.mubr.bf16.gmra.mrb[0].mxu0 %v1728
        %v1840 = vpop.f32.mrb[0].mxu0
        %v1841 = vadd.f32 0.0, %v1840
        %v1842 = vpop.f32.mrb[0].mxu0
        %v1843 = vpop.f32.mrb[0].mxu0
        %v1844 = vadd.f32 0.0, %v1843
        %v1845 = vpop.f32.mrb[0].mxu0
        %1846 = vmatprep.mubr.bf16.mxu0 0
        %1847 = vmatmul.mubr.bf16.gmra.mrb[0].mxu0 %v1729
        %v1848 = vpop.f32.mrb[0].mxu0
        %v1849 = vadd.f32 0.0, %v1848
        %v1850 = vpop.f32.mrb[0].mxu0
        %v1851 = vpop.f32.mrb[0].mxu0
        %v1852 = vadd.f32 0.0, %v1851
        %v1853 = vpop.f32.mrb[0].mxu0
        %1854 = vmatprep.mubr.bf16.mxu0 0
        %1855 = vmatmul.mubr.bf16.gmra.mrb[0].mxu0 %v1730
        %v1856 = vpop.f32.mrb[0].mxu0
        %v1857 = vadd.f32 0.0, %v1856
        %v1858 = vpop.f32.mrb[0].mxu0
        %v1859 = vpop.f32.mrb[0].mxu0
        %v1860 = vadd.f32 0.0, %v1859
        %v1861 = vpop.f32.mrb[0].mxu0
        %1862 = vmatprep.mubr.bf16.mxu0 0
        %1863 = vmatmul.mubr.bf16.gmra.mrb[0].mxu0 %v1731
        %v1864 = vpop.f32.mrb[0].mxu0
        %v1865 = vadd.f32 0.0, %v1864
        %v1866 = vpop.f32.mrb[0].mxu0
        %v1867 = vpop.f32.mrb[0].mxu0
        %v1868 = vadd.f32 0.0, %v1867
        %v1869 = vpop.f32.mrb[0].mxu0
        %1870 = vmatprep.mubr.bf16.mxu0 0
        %1871 = vmatmul.mubr.bf16.gmra.mrb[0].mxu0 %v1732
        %v1872 = vpop.f32.mrb[0].mxu0
        %v1873 = vadd.f32 0.0, %v1872
        %v1874 = vpop.f32.mrb[0].mxu0
        %v1875 = vpop.f32.mrb[0].mxu0
        %v1876 = vadd.f32 0.0, %v1875
        %v1877 = vpop.f32.mrb[0].mxu0
        %1878 = vmatprep.mubr.bf16.mxu0 0
        %1879 = vmatmul.mubr.bf16.gmra.mrb[0].mxu0 %v1733
        %v1880 = vpop.f32.mrb[0].mxu0
        %v1881 = vadd.f32 0.0, %v1880
        %v1882 = vpop.f32.mrb[0].mxu0
        %v1883 = vpop.f32.mrb[0].mxu0
        %v1884 = vadd.f32 0.0, %v1883
        %v1885 = vpop.f32.mrb[0].mxu0
        %1886 = vmatprep.mubr.bf16.mxu0 0
        %1887 = vmatmul.mubr.bf16.gmra.mrb[0].mxu0 %v1734
        %v1888 = vpop.f32.mrb[0].mxu0
        %v1889 = vadd.f32 0.0, %v1888
        %v1890 = vpop.f32.mrb[0].mxu0
        %v1891 = vpop.f32.mrb[0].mxu0
        %v1892 = vadd.f32 0.0, %v1891
        %v1893 = vpop.f32.mrb[0].mxu0
        %1894 = vmatprep.mubr.bf16.mxu0 0
        %1895 = vmatmul.mubr.bf16.gmra.mrb[0].mxu0 %v1735
        %v1896 = vpop.f32.mrb[0].mxu0
        %v1897 = vadd.f32 0.0, %v1896
        %v1898 = vpop.f32.mrb[0].mxu0
        %v1899 = vpop.f32.mrb[0].mxu0
        %v1900 = vadd.f32 0.0, %v1899
        %v1901 = vpop.f32.mrb[0].mxu0
        %1902 = vmatprep.mubr.bf16.mxu0 0
        %1903 = vmatmul.mubr.bf16.gmra.mrb[0].mxu0 %v1736
        %v1904 = vpop.f32.mrb[0].mxu0
        %v1905 = vadd.f32 0.0, %v1904
        %v1906 = vpop.f32.mrb[0].mxu0
        %v1907 = vpop.f32.mrb[0].mxu0
        %v1908 = vadd.f32 0.0, %v1907
        %v1909 = vpop.f32.mrb[0].mxu0
        %1910 = vmatprep.mubr.bf16.mxu0 0
        %1911 = vmatmul.mubr.bf16.gmra.mrb[0].mxu0 %v1737
        %v1912 = vpop.f32.mrb[0].mxu0
        %v1913 = vadd.f32 0.0, %v1912
        %v1914 = vpop.f32.mrb[0].mxu0
        %v1915 = vpop.f32.mrb[0].mxu0
        %v1916 = vadd.f32 0.0, %v1915
        %v1917 = vpop.f32.mrb[0].mxu0
        %1918 = vmatprep.mubr.bf16.mxu0 0
        %1919 = vmatmul.mubr.bf16.gmra.mrb[0].mxu0 %v1738
        %v1920 = vpop.f32.mrb[0].mxu0
        %v1921 = vadd.f32 0.0, %v1920
        %v1922 = vpop.f32.mrb[0].mxu0
        %v1923 = vpop.f32.mrb[0].mxu0
        %v1924 = vadd.f32 0.0, %v1923
        %v1925 = vpop.f32.mrb[0].mxu0
        %1926 = vmatprep.mubr.bf16.mxu0 0
        %1927 = vmatmul.mubr.bf16.gmra.mrb[0].mxu0 %v1739
        %v1928 = vpop.f32.mrb[0].mxu0
        %v1929 = vadd.f32 0.0, %v1928
        %v1930 = vpop.f32.mrb[0].mxu0
        %v1931 = vpop.f32.mrb[0].mxu0
        %v1932 = vadd.f32 0.0, %v1931
        %v1933 = vpop.f32.mrb[0].mxu0
        %1934 = vmatprep.mubr.bf16.mxu0 0
        %1935 = vmatmul.mubr.bf16.gmra.mrb[0].mxu0 %v1740
        %v1936 = vpop.f32.mrb[0].mxu0
        %v1937 = vadd.f32 0.0, %v1936
        %v1938 = vpop.f32.mrb[0].mxu0
        %v1939 = vpop.f32.mrb[0].mxu0
        %v1940 = vadd.f32 0.0, %v1939
        %v1941 = vpop.f32.mrb[0].mxu0
        %1942 = vmatprep.mubr.bf16.mxu0 0
        %1943 = vmatmul.mubr.bf16.gmra.mrb[0].mxu0 %v1741
        %v1944 = vpop.f32.mrb[0].mxu0
        %v1945 = vadd.f32 0.0, %v1944
        %v1946 = vpop.f32.mrb[0].mxu0
        %v1947 = vpop.f32.mrb[0].mxu0
        %v1948 = vadd.f32 0.0, %v1947
        %v1949 = vpop.f32.mrb[0].mxu0
        %1950 = vdwg.mxu0
        %v1951 = vlaneseq
        %v1952 = vshrl.u32 %v1951, 7
        %v1953 = vadd.s32 %v1952, 8
        %v1954 = vadd.s32 %v1952, 16
        %v1955 = vadd.s32 %v1952, 24
        %v1956 = vlaneseq
        %v1957 = vand.u32 %v1956, 127
        %v1958 = vadd.s32 %v1957, 128
        %v1959 = vmul.u32 %v1952, 8
        %v1960 = vmul.u32 %v1953, 8
        %v1961 = vmul.u32 %v1954, 8
        %v1962 = vmul.u32 %v1955, 8
        %vm1963 = vcmp.ge.s32.totalorder %v1957, %v1959
        %vm1964 = vcmp.ge.s32.totalorder %v1958, %v1959
        %vm1965 = vcmp.ge.s32.totalorder %v1957, %v1960
        %vm1966 = vcmp.ge.s32.totalorder %v1958, %v1960
        %vm1967 = vcmp.ge.s32.totalorder %v1957, %v1961
        %vm1968 = vcmp.ge.s32.totalorder %v1958, %v1961
        %vm1969 = vcmp.ge.s32.totalorder %v1957, %v1962
        %vm1970 = vcmp.ge.s32.totalorder %v1958, %v1962
        %v1971 = vadd.s32 %v1952, 1
        %v1972 = vadd.s32 %v1953, 1
        %v1973 = vadd.s32 %v1954, 1
        %v1974 = vadd.s32 %v1955, 1
        %v1975 = vmul.u32 %v1971, 8
        %v1976 = vmul.u32 %v1972, 8
        %v1977 = vmul.u32 %v1973, 8
        %v1978 = vmul.u32 %v1974, 8
        %vm1979 = vcmp.lt.s32.totalorder %v1957, %v1975
        %vm1980 = vcmp.lt.s32.totalorder %v1958, %v1975
        %vm1981 = vcmp.lt.s32.totalorder %v1957, %v1976
        %vm1982 = vcmp.lt.s32.totalorder %v1958, %v1976
        %vm1983 = vcmp.lt.s32.totalorder %v1957, %v1977
        %vm1984 = vcmp.lt.s32.totalorder %v1958, %v1977
        %vm1985 = vcmp.lt.s32.totalorder %v1957, %v1978
        %vm1986 = vcmp.lt.s32.totalorder %v1958, %v1978
        %vm1987 = vmand %vm1963, %vm1979
        %vm1988 = vmand %vm1964, %vm1980
        %vm1989 = vmand %vm1965, %vm1981
        %vm1990 = vmand %vm1966, %vm1982
        %vm1991 = vmand %vm1967, %vm1983
        %vm1992 = vmand %vm1968, %vm1984
        %vm1993 = vmand %vm1969, %vm1985
        %vm1994 = vmand %vm1970, %vm1986
        %v1995 = vsel %vm1987, 0.125, 0.0
        %v1996 = vsel %vm1988, 0.125, 0.0
        %v1997 = vsel %vm1989, 0.125, 0.0
        %v1998 = vsel %vm1990, 0.125, 0.0
        %v1999 = vsel %vm1991, 0.125, 0.0
        %v2000 = vsel %vm1992, 0.125, 0.0
        %v2001 = vsel %vm1993, 0.125, 0.0
        %v2002 = vsel %vm1994, 0.125, 0.0
        %v2003 = vpack.c.bf16 %v1997, %v1995
        %v2004 = vpack.c.bf16 %v1998, %v1996
        %v2005 = vpack.c.bf16 %v2001, %v1999
        %v2006 = vpack.c.bf16 %v2002, %v2000
        %v2007 = vpack.c.bf16 %v1828, %v1825
        %v2008 = vpack.c.bf16 %v1836, %v1833
        %v2009 = vpack.c.bf16 %v1844, %v1841
        %v2010 = vpack.c.bf16 %v1852, %v1849
        %v2011 = vpack.c.bf16 %v1860, %v1857
        %v2012 = vpack.c.bf16 %v1868, %v1865
        %v2013 = vpack.c.bf16 %v1876, %v1873
        %v2014 = vpack.c.bf16 %v1884, %v1881
        %v2015 = vpack.c.bf16 %v1892, %v1889
        %v2016 = vpack.c.bf16 %v1900, %v1897
        %v2017 = vpack.c.bf16 %v1908, %v1905
        %v2018 = vpack.c.bf16 %v1916, %v1913
        %v2019 = vpack.c.bf16 %v1924, %v1921
        %v2020 = vpack.c.bf16 %v1932, %v1929
        %v2021 = vpack.c.bf16 %v1940, %v1937
        %v2022 = vpack.c.bf16 %v1948, %v1945
        %v2023 = vlaneseq
        %v2024 = vshrl.u32 %v2023, 7
        %v2025 = vsub.s32 0, %v2024
        %v2026 = vrot.slane %v325, %v2025
        %2027 = vmatprep.subr.bf16.mxu0 0
        %2028 = vmatpush1.bf16.msra.mxu0 %v2007
        %2029 = vmatprep.subr.bf16.mxu0 0
        %2030 = vmatpush1.bf16.msra.mxu0 %v2008
        %2031 = vmatprep.subr.bf16.mxu0 0
        %2032 = vmatpush1.bf16.msra.mxu0 %v2009
        %2033 = vmatprep.subr.bf16.mxu0 0
        %2034 = vmatpush1.bf16.msra.mxu0 %v2010
        %2035 = vmatprep.subr.bf16.mxu0 0
        %2036 = vmatpush1.bf16.msra.mxu0 %v2011
        %2037 = vmatprep.subr.bf16.mxu0 0
        %2038 = vmatpush1.bf16.msra.mxu0 %v2012
        %2039 = vmatprep.subr.bf16.mxu0 0
        %2040 = vmatpush1.bf16.msra.mxu0 %v2013
        %2041 = vmatprep.subr.bf16.mxu0 0
        %2042 = vmatpush1.bf16.msra.mxu0 %v2014
        %2043 = vmatprep.subr.bf16.mxu0 0
        %2044 = vmatpush1.bf16.msra.mxu0 %v2015
        %2045 = vmatprep.subr.bf16.mxu0 0
        %2046 = vmatpush1.bf16.msra.mxu0 %v2016
        %2047 = vmatprep.subr.bf16.mxu0 0
        %2048 = vmatpush1.bf16.msra.mxu0 %v2017
        %2049 = vmatprep.subr.bf16.mxu0 0
        %2050 = vmatpush1.bf16.msra.mxu0 %v2018
        %2051 = vmatprep.subr.bf16.mxu0 0
        %2052 = vmatpush1.bf16.msra.mxu0 %v2019
        %2053 = vmatprep.subr.bf16.mxu0 0
        %2054 = vmatpush1.bf16.msra.mxu0 %v2020
        %2055 = vmatprep.subr.bf16.mxu0 0
        %2056 = vmatpush1.bf16.msra.mxu0 %v2021
        %2057 = vmatprep.subr.bf16.mxu0 0
        %2058 = vmatpush1.bf16.msra.mxu0 %v2022
        %2059 = vmatprep.mubr.bf16.mxu0 %v2004
        %2060 = vmatmul.mubr.bf16.gmra.mrb[0].mxu0 %v2003
        %v2061 = vpop.f32.mrb[0].mxu0
        %v2062 = vadd.f32 %v2026, %v2061
        %v2063 = vpop.f32.mrb[0].mxu0
        %v2064 = vpop.f32.mrb[0].mxu0
        %v2065 = vadd.f32 %v2026, %v2064
        %v2066 = vpop.f32.mrb[0].mxu0
        %2067 = vmatprep.mubr.bf16.mxu0 %v2006
        %2068 = vmatmul.mubr.bf16.gmra.mrb[0].mxu0 %v2005
        %v2069 = vpop.f32.mrb[0].mxu0
        %v2070 = vadd.f32 %v2026, %v2069
        %v2071 = vpop.f32.mrb[0].mxu0
        %v2072 = vpop.f32.mrb[0].mxu0
        %v2073 = vadd.f32 %v2026, %v2072
        %v2074 = vpop.f32.mrb[0].mxu0
        %2075 = vdwg.mxu0
        %2076 = vst [vmem:[%s231] sm:$0xff] %v2062
        %2077 = vst [vmem:[%s231 + $0x8] sm:$0xff] %v2065
        %2078 = vst [vmem:[%s231 + $0x10] sm:$0xff] %v2070
        %2079 = vst [vmem:[%s231 + $0x18] sm:$0xff] %v2073
        %s2080 = sand.u32 %s123, 1
        %s2081 = scalar_lea.sflag [#allocation4], %s2080
        %s2082 = sand.u32 %s123, 1
        %s2083 = smul.addr %s2082, 32
        %s2084 = scalar_lea.vmem [#allocation5], %s2083
        // Predicated region
        $region41: #{tpu_custom_call.1} parent=35 // pred_check
          %p2085 = pneg %p133
        $region42: #{tpu_custom_call.1} parent=35 // pred_check_branch
          %2087 = sbr.rel (%p2085) target = $region44
        $region43: #{tpu_custom_call.1} parent=35 // pred_region
          %s2088 = smul.u32 4, %s21
          %s2090 = ssub.s32 512, 512
          %2091 = vsyncadd %s2081, %s2090
          %s2092 = smul.addr %s2088, 128
          %s2093 = scalar_lea.hbm %s4, %s2092
          %s2094 = sshll.u32 %s2084, 4
          %s2095 = int_to_ptr.vmem [resolvable:$true] %s2094
          %2100 = dma.vmem_to_hbm [thread:$0]  %s2095, 512, %s2093, %s2081, 128, 128, 8
        $region44: #{tpu_custom_call.1} parent=35 // pred_fallthru
          _
      $region36: #{tpu_custom_call.1} parent=5 // pred_fallthru
        _
      %p2101 = scmp.le.s32.totalorder 2, %s16
      // Predicated region
      $region45: #{tpu_custom_call.1} parent=5 // pred_check
        %p2102 = pneg %p2101
      $region46: #{tpu_custom_call.1} parent=5 // pred_check_branch
        %2104 = sbr.rel (%p2102) target = $region48
      $region47: #{tpu_custom_call.1} parent=5 // pred_region
        %s2105 = ssub.s32 %s16, 2
        // Predicated region
        $region49: #{tpu_custom_call.1} parent=47 // pred_check
          %p2106 = pneg %p139
        $region50: #{tpu_custom_call.1} parent=47 // pred_check_branch
          %2108 = sbr.rel (%p2106) target = $region52
        $region51: #{tpu_custom_call.1} parent=47 // pred_region
          %s2109 = sand.u32 %s124, 1
          %s2110 = scalar_lea.sflag [#allocation4], %s2109
          %s2111 = sand.u32 %s124, 1
          %s2112 = smul.addr %s2111, 32
          %s2113 = scalar_lea.vmem [#allocation5], %s2112
          %2114 = dma.done %s2110, 512
        $region52: #{tpu_custom_call.1} parent=47 // pred_fallthru
          _
      $region48: #{tpu_custom_call.1} parent=5 // pred_fallthru
        _
    $region6: #{tpu_custom_call.1} parent=1 // loop_footer
      %s20 = sadd.s32 1, %s16
    $region7: #{tpu_custom_call.1} parent=1 // loop_footer_branch
      %15 = sbr.rel target = $region3
    $region8: #{tpu_custom_call.1} parent=1 // loop_exit
      _
    %2115 = vsyncpa [#allocation3], 1
    %s2116 = scalar_lea.sflag [#allocation3], 1
    %2117 = vsyncpa %s2116, 1
    %2118 = vsyncpa [#allocation4], 1
    %s2119 = scalar_lea.sflag [#allocation4], 1
    %2120 = vsyncpa %s2119, 1

</llo_original>
